<compile_context>
chip_gen: v7x
topology: tpu7x:2x2x1
jax: 0.10.0
libtpu: 0.0.40
codegen_flags: <defaults>
</compile_context>

<pallas_src>
import functools

import jax
import jax.numpy as jnp
from jax.experimental import pallas as pl
from jax.experimental.pallas import tpu as pltpu

LANE = 128


def _round_up(n, m):
    return ((n + m - 1) // m) * m


def fc_kernel(x_ref, w1_ref, b1_ref, w2_ref, b2_ref, w3_ref, b3_ref, o_ref):
    # Cast x to the weight dtype (bf16) in-kernel so both MXU operands are
    # bf16 (critical on MXU-bound v5e) without a wrapper-side HBM pass.
    x = x_ref[...].astype(w1_ref.dtype)
    # fc1 + ReLU (MXU matmul, f32 accumulation)
    h1 = jnp.dot(x, w1_ref[...], preferred_element_type=jnp.float32)
    h1 = jnp.maximum(h1 + b1_ref[...], 0.0)
    # fc2 + ReLU
    h2 = jnp.dot(h1.astype(w2_ref.dtype), w2_ref[...],
                 preferred_element_type=jnp.float32)
    h2 = jnp.maximum(h2 + b2_ref[...], 0.0)
    # fc3 (no activation)
    o = jnp.dot(h2.astype(w3_ref.dtype), w3_ref[...],
                preferred_element_type=jnp.float32) + b3_ref[...]
    o_ref[...] = o.astype(o_ref.dtype)


def init_params(key, imgsz=28, num_classes=10):
    """Deterministic init mimicking PyTorch nn.Linear default (uniform +/-1/sqrt(fan_in))."""
    dims = [(imgsz * imgsz, 300), (300, 100), (100, num_classes)]
    params = []
    for i, (fan_in, fan_out) in enumerate(dims):
        kw, kb = jax.random.split(jax.random.fold_in(key, i))
        bound = 1.0 / (fan_in ** 0.5)
        w = jax.random.uniform(kw, (fan_in, fan_out), jnp.float32, -bound, bound)
        b = jax.random.uniform(kb, (1, fan_out), jnp.float32, -bound, bound)
        params.extend([w, b])
    return tuple(params)


def prepare_params(params, w_dtype=jnp.bfloat16):
    """One-time: zero-pad feature dims to multiples of 128, cast weights to bf16."""
    w1, b1, w2, b2, w3, b3 = params
    d0 = w1.shape[0]                       # 784 (full-dim block, no pad needed)
    h1 = _round_up(w1.shape[1], LANE)      # 300 -> 384
    h2 = _round_up(w2.shape[1], LANE)      # 100 -> 128
    nc = _round_up(w3.shape[1], LANE)      # 10  -> 128

    def pad2(a, rows, cols):
        return jnp.pad(a, ((0, rows - a.shape[0]), (0, cols - a.shape[1])))

    w1p = pad2(w1, d0, h1).astype(w_dtype)
    w2p = pad2(w2, h1, h2).astype(w_dtype)
    w3p = pad2(w3, h2, nc).astype(w_dtype)
    b1p = pad2(b1, 1, h1).astype(jnp.float32)
    b2p = pad2(b2, 1, h2).astype(jnp.float32)
    b3p = pad2(b3, 1, nc).astype(jnp.float32)
    return (w1p, b1p, w2p, b2p, w3p, b3p)


@functools.partial(jax.jit, static_argnames=("num_classes", "tile_b"))
def fc_forward(x, padded_params, num_classes=10, tile_b=1024):
    """x: any shape flattening to (B, 784). Returns (B, num_classes) f32 logits."""
    w1, b1, w2, b2, w3, b3 = padded_params
    d_in = w1.shape[0]
    n_pad = w3.shape[1]                    # padded output width (128)

    # Row-major flatten, matching torch x.view(-1, 28*28). No dtype cast and no
    # batch padding here: both would cost an extra HBM pass over x.
    x2d = x.reshape(-1, d_in)
    B = x2d.shape[0]

    # Batch tile: multiple of 16 (covers f32 (8,128) and bf16 (16,128) min
    # tiles), <= tile_b, and small enough that the grid has >= 2 steps when B
    # allows, so "parallel" sharding can use both v7x TensorCores.
    tb = min(tile_b, _round_up(pl.cdiv(max(B, 1), 2), 16))
    tb = _round_up(max(tb, 16), 16)
    grid = (pl.cdiv(B, tb),)               # remainder block handled by Pallas

    flops = 2 * B * (d_in * w1.shape[1]
                     + w1.shape[1] * w2.shape[1]
                     + w2.shape[1] * n_pad)
    bytes_accessed = (x2d.size * x2d.dtype.itemsize
                      + sum(p.size * p.dtype.itemsize for p in padded_params)
                      + B * n_pad * 4)

    # Constant index_map + single buffer: weights/biases stay VMEM-resident
    # and are never double-buffered.
    const = lambda shape: pl.BlockSpec(shape, lambda i: (0, 0),
                                       pipeline_mode=pl.Buffered(1))

    out = pl.pallas_call(
        fc_kernel,
        out_shape=jax.ShapeDtypeStruct((B, n_pad), jnp.float32),
        grid=grid,
        in_specs=[
            pl.BlockSpec((tb, d_in), lambda i: (i, 0)),   # x: tiled over batch
            const(w1.shape), const(b1.shape),
            const(w2.shape), const(b2.shape),
            const(w3.shape), const(b3.shape),
        ],
        out_specs=pl.BlockSpec((tb, n_pad), lambda i: (i, 0)),  # lane-dense output
        compiler_params=pltpu.CompilerParams(
            dimension_semantics=("parallel",),   # megacore-shard batch on v7x
            vmem_limit_bytes=32 << 20,           # > v5e 16 MiB scoped default, < v7x 64 MiB phys
        ),
        cost_estimate=pl.CostEstimate(flops=flops, transcendentals=0,
                                      bytes_accessed=bytes_accessed),
    )(x2d, w1, b1, w2, b2, w3, b3)

    return out[:B, :num_classes]


def fc_reference(x, params, w_dtype=jnp.bfloat16):
    """Pure-JAX reference mirroring the kernel's bf16-operand / f32-accum math."""
    w1, b1, w2, b2, w3, b3 = params
    x2d = x.reshape(-1, w1.shape[0]).astype(w_dtype)
    h1 = jnp.maximum(jnp.dot(x2d, w1.astype(w_dtype),
                             preferred_element_type=jnp.float32) + b1, 0.0)
    h2 = jnp.maximum(jnp.dot(h1.astype(w_dtype), w2.astype(w_dtype),
                             preferred_element_type=jnp.float32) + b2, 0.0)
    return jnp.dot(h2.astype(w_dtype), w3.astype(w_dtype),
                   preferred_element_type=jnp.float32) + b3


if __name__ == "__main__":
    key = jax.random.PRNGKey(0)
    kx, kp = jax.random.split(key)

    imgsz, num_classes = 28, 10
    params = init_params(kp, imgsz=imgsz, num_classes=num_classes)
    padded = prepare_params(params)

    # Small batch (single partial tile: block bigger than the batch).
    x_small = jax.random.normal(kx, (2, 1, imgsz, imgsz), jnp.float32)
    out_small = jax.block_until_ready(fc_forward(x_small, padded,
                                                 num_classes=num_classes))
    ref_small = fc_reference(x_small, params)
    assert out_small.shape == (2, num_classes), out_small.shape
    assert jnp.allclose(out_small, ref_small, atol=2e-3, rtol=2e-3), "mismatch (small batch)"

    # Larger batch: exercises the >=2-step grid and the remainder block
    # (B=300 is not a multiple of the chosen tile) without any wrapper-side pad.
    x_big = jax.random.normal(jax.random.fold_in(kx, 1), (300, 1, imgsz, imgsz),
                              jnp.float32)
    out_big = jax.block_until_ready(fc_forward(x_big, padded,
                                               num_classes=num_classes, tile_b=128))
    ref_big = fc_reference(x_big, params)
    assert out_big.shape == (300, num_classes), out_big.shape
    assert jnp.allclose(out_big, ref_big, atol=2e-3, rtol=2e-3), "mismatch (big batch)"

    print("KERNEL_OK")
</pallas_src>

<mosaic_0001>
module attributes {stable_mosaic.version = 11 : i64} {
  func.func @fc_kernel(%arg0: i32, %arg1: memref<16x784xf32, #tpu.memory_space<vmem>>, %arg2: memref<784x384xbf16, #tpu.memory_space<vmem>>, %arg3: memref<1x384xf32, #tpu.memory_space<vmem>>, %arg4: memref<384x128xbf16, #tpu.memory_space<vmem>>, %arg5: memref<1x128xf32, #tpu.memory_space<vmem>>, %arg6: memref<128x128xbf16, #tpu.memory_space<vmem>>, %arg7: memref<1x128xf32, #tpu.memory_space<vmem>>, %arg8: memref<16x128xf32, #tpu.memory_space<vmem>>) attributes {dimension_semantics = [#tpu.dimension_semantics<parallel>], iteration_bounds = array<i64: 1>, scalar_prefetch = 0 : i64, scratch_operands = 0 : i64, tpu.core_type = #tpu.core_type<tc>, window_params = [{transform_indices = @transform_0, window_bounds = array<i64: 16, 784>}, {pipeline_mode = #tpu.pipeline_mode<synchronous>, transform_indices = @transform_1, window_bounds = array<i64: 784, 384>}, {pipeline_mode = #tpu.pipeline_mode<synchronous>, transform_indices = @transform_2, window_bounds = array<i64: 1, 384>}, {pipeline_mode = #tpu.pipeline_mode<synchronous>, transform_indices = @transform_3, window_bounds = array<i64: 384, 128>}, {pipeline_mode = #tpu.pipeline_mode<synchronous>, transform_indices = @transform_4, window_bounds = array<i64: 1, 128>}, {pipeline_mode = #tpu.pipeline_mode<synchronous>, transform_indices = @transform_5, window_bounds = array<i64: 128, 128>}, {pipeline_mode = #tpu.pipeline_mode<synchronous>, transform_indices = @transform_6, window_bounds = array<i64: 1, 128>}, {transform_indices = @transform_7, window_bounds = array<i64: 16, 128>}]} {
    %c0 = arith.constant 0 : index
    %c0_0 = arith.constant 0 : index
    %0 = vector.load %arg1[%c0, %c0_0] : memref<16x784xf32, #tpu.memory_space<vmem>>, vector<16x784xf32>
    %1 = arith.truncf %0 : vector<16x784xf32> to vector<16x784xbf16>
    %c0_1 = arith.constant 0 : index
    %c0_2 = arith.constant 0 : index
    %2 = vector.load %arg2[%c0_1, %c0_2] : memref<784x384xbf16, #tpu.memory_space<vmem>>, vector<784x384xbf16>
    %cst = arith.constant dense<0.000000e+00> : vector<16x384xf32>
    %3 = tpu.matmul %1, %2, %cst {dimension_numbers = #tpu.dot_dimension_numbers<[1], [0], [0], [1], [0, 0, 1, 1], [], []>} : vector<16x784xbf16>, vector<784x384xbf16>, vector<16x384xf32> -> vector<16x384xf32>
    %c0_3 = arith.constant 0 : index
    %c0_4 = arith.constant 0 : index
    %4 = vector.load %arg3[%c0_3, %c0_4] : memref<1x384xf32, #tpu.memory_space<vmem>>, vector<1x384xf32>
    %5 = vector.broadcast %4 : vector<1x384xf32> to vector<16x384xf32>
    %6 = arith.addf %3, %5 : vector<16x384xf32>
    %cst_5 = arith.constant 0.000000e+00 : f32
    %7 = vector.broadcast %cst_5 : f32 to vector<16x384xf32>
    %8 = arith.maximumf %6, %7 : vector<16x384xf32>
    %9 = arith.truncf %8 : vector<16x384xf32> to vector<16x384xbf16>
    %c0_6 = arith.constant 0 : index
    %c0_7 = arith.constant 0 : index
    %10 = vector.load %arg4[%c0_6, %c0_7] : memref<384x128xbf16, #tpu.memory_space<vmem>>, vector<384x128xbf16>
    %cst_8 = arith.constant dense<0.000000e+00> : vector<16x128xf32>
    %11 = tpu.matmul %9, %10, %cst_8 {dimension_numbers = #tpu.dot_dimension_numbers<[1], [0], [0], [1], [0, 0, 1, 1], [], []>} : vector<16x384xbf16>, vector<384x128xbf16>, vector<16x128xf32> -> vector<16x128xf32>
    %c0_9 = arith.constant 0 : index
    %c0_10 = arith.constant 0 : index
    %12 = vector.load %arg5[%c0_9, %c0_10] : memref<1x128xf32, #tpu.memory_space<vmem>>, vector<1x128xf32>
    %13 = vector.broadcast %12 : vector<1x128xf32> to vector<16x128xf32>
    %14 = arith.addf %11, %13 : vector<16x128xf32>
    %cst_11 = arith.constant 0.000000e+00 : f32
    %15 = vector.broadcast %cst_11 : f32 to vector<16x128xf32>
    %16 = arith.maximumf %14, %15 : vector<16x128xf32>
    %17 = arith.truncf %16 : vector<16x128xf32> to vector<16x128xbf16>
    %c0_12 = arith.constant 0 : index
    %c0_13 = arith.constant 0 : index
    %18 = vector.load %arg6[%c0_12, %c0_13] : memref<128x128xbf16, #tpu.memory_space<vmem>>, vector<128x128xbf16>
    %cst_14 = arith.constant dense<0.000000e+00> : vector<16x128xf32>
    %19 = tpu.matmul %17, %18, %cst_14 {dimension_numbers = #tpu.dot_dimension_numbers<[1], [0], [0], [1], [0, 0, 1, 1], [], []>} : vector<16x128xbf16>, vector<128x128xbf16>, vector<16x128xf32> -> vector<16x128xf32>
    %c0_15 = arith.constant 0 : index
    %c0_16 = arith.constant 0 : index
    %20 = vector.load %arg7[%c0_15, %c0_16] : memref<1x128xf32, #tpu.memory_space<vmem>>, vector<1x128xf32>
    %21 = vector.broadcast %20 : vector<1x128xf32> to vector<16x128xf32>
    %22 = arith.addf %19, %21 : vector<16x128xf32>
    %c0_17 = arith.constant 0 : index
    %c0_18 = arith.constant 0 : index
    %23 = vector.load %arg8[%c0_17, %c0_18] : memref<16x128xf32, #tpu.memory_space<vmem>>, vector<16x128xf32>
    tpu.vector_store %arg8[%c0_17, %c0_18], %22 {strides = array<i32>} : memref<16x128xf32, #tpu.memory_space<vmem>>, vector<16x128xf32>,
    return
  }
  func.func @transform_0(%arg0: i32) -> (i32, i32) {
    %c0_i32 = arith.constant 0 : i32
    %c0_i32_0 = arith.constant 0 : i32
    return %arg0, %c0_i32 : i32, i32
  }
  func.func @transform_1(%arg0: i32) -> (i32, i32) {
    %c0_i32 = arith.constant 0 : i32
    %c0_i32_0 = arith.constant 0 : i32
    %c0_i32_1 = arith.constant 0 : i32
    return %c0_i32, %c0_i32_0 : i32, i32
  }
  func.func @transform_2(%arg0: i32) -> (i32, i32) {
    %c0_i32 = arith.constant 0 : i32
    %c0_i32_0 = arith.constant 0 : i32
    %c0_i32_1 = arith.constant 0 : i32
    return %c0_i32, %c0_i32_0 : i32, i32
  }
  func.func @transform_3(%arg0: i32) -> (i32, i32) {
    %c0_i32 = arith.constant 0 : i32
    %c0_i32_0 = arith.constant 0 : i32
    %c0_i32_1 = arith.constant 0 : i32
    return %c0_i32, %c0_i32_0 : i32, i32
  }
  func.func @transform_4(%arg0: i32) -> (i32, i32) {
    %c0_i32 = arith.constant 0 : i32
    %c0_i32_0 = arith.constant 0 : i32
    %c0_i32_1 = arith.constant 0 : i32
    return %c0_i32, %c0_i32_0 : i32, i32
  }
  func.func @transform_5(%arg0: i32) -> (i32, i32) {
    %c0_i32 = arith.constant 0 : i32
    %c0_i32_0 = arith.constant 0 : i32
    %c0_i32_1 = arith.constant 0 : i32
    return %c0_i32, %c0_i32_0 : i32, i32
  }
  func.func @transform_6(%arg0: i32) -> (i32, i32) {
    %c0_i32 = arith.constant 0 : i32
    %c0_i32_0 = arith.constant 0 : i32
    %c0_i32_1 = arith.constant 0 : i32
    return %c0_i32, %c0_i32_0 : i32, i32
  }
  func.func @transform_7(%arg0: i32) -> (i32, i32) {
    %c0_i32 = arith.constant 0 : i32
    %c0_i32_0 = arith.constant 0 : i32
    return %arg0, %c0_i32 : i32, i32
  }
}

</mosaic_0001>

<llo_original>
// kernel: fc_forward.1
$region0: #{fc_forward.1}
  #allocation0 [shape = 'u32[]', space=smem, size = 0x4, offset = 0x4, fixed_abs, tag = 'smem constant byte address 0x4 - core index']
  #allocation1 [shape = 'u32[144,128]{1,0:T(1,128)}', space=vmem, size = 0x12000, scoped, tag = 'internal scratch']
  %s0 = inlined_call_operand.vmem [shape: f32[2,784], index: 0, kind: input, shape index: {}]
  %s1 = inlined_call_operand.hbm [shape: bf16[784,384], index: 1, kind: input, shape index: {}]
  %s2 = inlined_call_operand.vmem [shape: f32[1,384], index: 2, kind: input, shape index: {}]
  %s3 = inlined_call_operand.vmem [shape: bf16[384,128], index: 3, kind: input, shape index: {}]
  %s4 = inlined_call_operand.vmem [shape: f32[1,128], index: 4, kind: input, shape index: {}]
  %s5 = inlined_call_operand.hbm [shape: bf16[128,128], index: 5, kind: input, shape index: {}]
  %s6 = inlined_call_operand.vmem [shape: f32[1,128], index: 6, kind: input, shape index: {}]
  %s7 = inlined_call_operand.hbm [shape: f32[2,128], index: 7, kind: output, shape index: {}]
  %s8 = sld [smem:[#allocation0]]
  $region46: #{fc_forward.1} parent=0
    _
  %s10 = ssub.s32 1, %s8
  %s11 = scalar_select 0, %s10, %s8
  $region1: #{fc_forward.1} parent=0
    #allocation2 [shape = 'u8[602112]{0}', space=vmem, size = 0x93000, scoped, tag = 'input window, operand 1, single buffered']
    #allocation3 [shape = 's32[1]{0}', space=sflag, size = 0x4, scoped, tag = 'scoped memory for fc_forward.1']
    #allocation4 [shape = 's32[1]{0}', space=sflag, size = 0x4, scoped, tag = 'scoped memory for fc_forward.1']
    #allocation5 [shape = 'u8[32768]{0}', space=vmem, size = 0x8000, scoped, tag = 'input window, operand 5, single buffered']
    #allocation6 [shape = 's32[1]{0}', space=sflag, size = 0x4, scoped, tag = 'scoped memory for fc_forward.1']
    #allocation7 [shape = 'u8[8192]{0}', space=vmem, size = 0x2000, scoped, tag = 'output window, operand 0, single buffered']
    %12 = vsyncpa [#allocation3], 0
    %13 = vsyncpa [#allocation6], 0
    %14 = vsyncpa [#allocation4], 0
    // Predicated region
    $region2: #{fc_forward.1} parent=1 // pred_check
      _
    $region3: #{fc_forward.1} parent=1 // pred_check_branch
      %16 = sbr.rel (0) target = $region5
    $region4: #{fc_forward.1} parent=1 // pred_region
      _
    $region5: #{fc_forward.1} parent=1 // pred_fallthru
      _
    // Predicated region
    $region6: #{fc_forward.1} parent=1 // pred_check
      _
    $region7: #{fc_forward.1} parent=1 // pred_check_branch
      %18 = sbr.rel (0) target = $region9
    $region8: #{fc_forward.1} parent=1 // pred_region
      %s20 = ssub.s32 18816, 18816
      %21 = vsyncadd [#allocation3], %s20
      %s22 = sshll.u32 [#allocation2], 4
      %s23 = int_to_ptr.vmem [resolvable:$true] %s22
      %28 = dma.hbm_to_vmem [thread:$0]  %s1, 18816, %s23, [#allocation3], 192, 192, 12
    $region9: #{fc_forward.1} parent=1 // pred_fallthru
      _
    // Predicated region
    $region10: #{fc_forward.1} parent=1 // pred_check
      _
    $region11: #{fc_forward.1} parent=1 // pred_check_branch
      %30 = sbr.rel (0) target = $region13
    $region12: #{fc_forward.1} parent=1 // pred_region
      _
    $region13: #{fc_forward.1} parent=1 // pred_fallthru
      _
    // Predicated region
    $region14: #{fc_forward.1} parent=1 // pred_check
      _
    $region15: #{fc_forward.1} parent=1 // pred_check_branch
      %32 = sbr.rel (0) target = $region17
    $region16: #{fc_forward.1} parent=1 // pred_region
      _
    $region17: #{fc_forward.1} parent=1 // pred_fallthru
      _
    // Predicated region
    $region18: #{fc_forward.1} parent=1 // pred_check
      _
    $region19: #{fc_forward.1} parent=1 // pred_check_branch
      %34 = sbr.rel (0) target = $region21
    $region20: #{fc_forward.1} parent=1 // pred_region
      _
    $region21: #{fc_forward.1} parent=1 // pred_fallthru
      _
    // Predicated region
    $region22: #{fc_forward.1} parent=1 // pred_check
      _
    $region23: #{fc_forward.1} parent=1 // pred_check_branch
      %36 = sbr.rel (0) target = $region25
    $region24: #{fc_forward.1} parent=1 // pred_region
      %s38 = ssub.s32 1024, 1024
      %39 = vsyncadd [#allocation6], %s38
      %s40 = sshll.u32 [#allocation5], 4
      %s41 = int_to_ptr.vmem [resolvable:$true] %s40
      %46 = dma.hbm_to_vmem [thread:$0]  %s5, 1024, %s41, [#allocation6], 64, 64, 4
    $region25: #{fc_forward.1} parent=1 // pred_fallthru
      _
    // Predicated region
    $region26: #{fc_forward.1} parent=1 // pred_check
      _
    $region27: #{fc_forward.1} parent=1 // pred_check_branch
      %48 = sbr.rel (0) target = $region29
    $region28: #{fc_forward.1} parent=1 // pred_region
      _
    $region29: #{fc_forward.1} parent=1 // pred_fallthru
      _
    // Predicated region
    $region30: #{fc_forward.1} parent=1 // pred_check
      _
    $region31: #{fc_forward.1} parent=1 // pred_check_branch
      %50 = sbr.rel (0) target = $region33
    $region32: #{fc_forward.1} parent=1 // pred_region
      %51 = dma.done [#allocation3], 18816
    $region33: #{fc_forward.1} parent=1 // pred_fallthru
      _
    // Predicated region
    $region34: #{fc_forward.1} parent=1 // pred_check
      _
    $region35: #{fc_forward.1} parent=1 // pred_check_branch
      %53 = sbr.rel (0) target = $region37
    $region36: #{fc_forward.1} parent=1 // pred_region
      %54 = dma.done [#allocation6], 1024
    $region37: #{fc_forward.1} parent=1 // pred_fallthru
      _
    %v56 = vld [vmem:[%s0] sm:$0xff]
    %v57 = vld [vmem:[%s0 + $0x8] sm:$0x3f]
    %v58 = vld [vmem:[%s0 + $0xe] sm:$0xff]
    %v59 = vld [vmem:[%s0 + $0x16] sm:$0x3f]
    %v60 = vld [vmem:[%s0 + $0x1c] sm:$0xff]
    %v61 = vld [vmem:[%s0 + $0x24] sm:$0x3f]
    %v62 = vld [vmem:[%s0 + $0x2a] sm:$0xff]
    %v63 = vld [vmem:[%s0 + $0x32] sm:$0x3f]
    %v64 = vld [vmem:[%s0 + $0x38] sm:$0xff]
    %v65 = vld [vmem:[%s0 + $0x40] sm:$0x3f]
    %v66 = vld [vmem:[%s0 + $0x46] sm:$0xff]
    %v67 = vld [vmem:[%s0 + $0x4e] sm:$0x3f]
    %v68 = vld [vmem:[%s0 + $0x54] sm:$0xff]
    %v69 = vld [vmem:[%s0 + $0x5c] sm:$0x3f]
    %v70 = vld [vmem:[%s0 + $0x62] sm:$0xff]
    %v71 = vld [vmem:[%s0 + $0x6a] sm:$0x3f]
    %v88 = vcombine.low %v56, %v58
    %v89 = vcombine.high %v56, %v58
    %v90 = vcombine.low %v60, %v62
    %v91 = vcombine.high %v60, %v62
    %v93 = vunpack.c.l.s4 1983009808
    %v94 = vunpack.c.0.s8 %v93
    %v95 = vlaneseq
    %v96 = vshrl.u32 %v95, 7
    %v97 = vsub.s32 %v94, %v96
    %v98 = vrot.slane %v88, %v97
    %v100 = vunpack.c.l.s4 1983009808
    %v101 = vunpack.c.0.s8 %v100
    %v102 = vlaneseq
    %v103 = vshrl.u32 %v102, 7
    %v104 = vsub.s32 %v101, %v103
    %v105 = vrot.slane %v89, %v104
    %v107 = vunpack.c.l.s4 1983009808
    %v108 = vunpack.c.0.s8 %v107
    %v109 = vlaneseq
    %v110 = vshrl.u32 %v109, 7
    %v111 = vsub.s32 %v108, %v110
    %v112 = vrot.slane %v90, %v111
    %v114 = vunpack.c.l.s4 1983009808
    %v115 = vunpack.c.0.s8 %v114
    %v116 = vlaneseq
    %v117 = vshrl.u32 %v116, 7
    %v118 = vsub.s32 %v115, %v117
    %v119 = vrot.slane %v91, %v118
    %v120 = vcombine.low %v98, %v112
    %v121 = vcombine.high %v98, %v112
    %v122 = vcombine.low %v105, %v119
    %v123 = vcombine.high %v105, %v119
    %v124 = vcombine.low %v57, %v59
    %v125 = vcombine.high %v57, %v59
    %v126 = vcombine.low %v61, %v63
    %v127 = vcombine.high %v61, %v63
    %v129 = vunpack.c.l.s4 1983009808
    %v130 = vunpack.c.0.s8 %v129
    %v131 = vlaneseq
    %v132 = vshrl.u32 %v131, 7
    %v133 = vsub.s32 %v130, %v132
    %v134 = vrot.slane %v124, %v133
    %v136 = vunpack.c.l.s4 1983009808
    %v137 = vunpack.c.0.s8 %v136
    %v138 = vlaneseq
    %v139 = vshrl.u32 %v138, 7
    %v140 = vsub.s32 %v137, %v139
    %v141 = vrot.slane %v125, %v140
    %v143 = vunpack.c.l.s4 1983009808
    %v144 = vunpack.c.0.s8 %v143
    %v145 = vlaneseq
    %v146 = vshrl.u32 %v145, 7
    %v147 = vsub.s32 %v144, %v146
    %v148 = vrot.slane %v126, %v147
    %v150 = vunpack.c.l.s4 1983009808
    %v151 = vunpack.c.0.s8 %v150
    %v152 = vlaneseq
    %v153 = vshrl.u32 %v152, 7
    %v154 = vsub.s32 %v151, %v153
    %v155 = vrot.slane %v127, %v154
    %v156 = vcombine.low %v134, %v148
    %v157 = vcombine.high %v134, %v148
    %v158 = vcombine.low %v141, %v155
    %v159 = vcombine.low %v64, %v66
    %v160 = vcombine.high %v64, %v66
    %v161 = vcombine.low %v68, %v70
    %v162 = vcombine.high %v68, %v70
    %v164 = vunpack.c.l.s4 1983009808
    %v165 = vunpack.c.0.s8 %v164
    %v166 = vlaneseq
    %v167 = vshrl.u32 %v166, 7
    %v168 = vsub.s32 %v165, %v167
    %v169 = vrot.slane %v159, %v168
    %v171 = vunpack.c.l.s4 1983009808
    %v172 = vunpack.c.0.s8 %v171
    %v173 = vlaneseq
    %v174 = vshrl.u32 %v173, 7
    %v175 = vsub.s32 %v172, %v174
    %v176 = vrot.slane %v160, %v175
    %v178 = vunpack.c.l.s4 1983009808
    %v179 = vunpack.c.0.s8 %v178
    %v180 = vlaneseq
    %v181 = vshrl.u32 %v180, 7
    %v182 = vsub.s32 %v179, %v181
    %v183 = vrot.slane %v161, %v182
    %v185 = vunpack.c.l.s4 1983009808
    %v186 = vunpack.c.0.s8 %v185
    %v187 = vlaneseq
    %v188 = vshrl.u32 %v187, 7
    %v189 = vsub.s32 %v186, %v188
    %v190 = vrot.slane %v162, %v189
    %v191 = vcombine.low %v169, %v183
    %v192 = vcombine.high %v169, %v183
    %v193 = vcombine.low %v176, %v190
    %v194 = vcombine.high %v176, %v190
    %v195 = vcombine.low %v65, %v67
    %v196 = vcombine.high %v65, %v67
    %v197 = vcombine.low %v69, %v71
    %v198 = vcombine.high %v69, %v71
    %v200 = vunpack.c.l.s4 1983009808
    %v201 = vunpack.c.0.s8 %v200
    %v202 = vlaneseq
    %v203 = vshrl.u32 %v202, 7
    %v204 = vsub.s32 %v201, %v203
    %v205 = vrot.slane %v195, %v204
    %v207 = vunpack.c.l.s4 1983009808
    %v208 = vunpack.c.0.s8 %v207
    %v209 = vlaneseq
    %v210 = vshrl.u32 %v209, 7
    %v211 = vsub.s32 %v208, %v210
    %v212 = vrot.slane %v196, %v211
    %v214 = vunpack.c.l.s4 1983009808
    %v215 = vunpack.c.0.s8 %v214
    %v216 = vlaneseq
    %v217 = vshrl.u32 %v216, 7
    %v218 = vsub.s32 %v215, %v217
    %v219 = vrot.slane %v197, %v218
    %v221 = vunpack.c.l.s4 1983009808
    %v222 = vunpack.c.0.s8 %v221
    %v223 = vlaneseq
    %v224 = vshrl.u32 %v223, 7
    %v225 = vsub.s32 %v222, %v224
    %v226 = vrot.slane %v198, %v225
    %v227 = vcombine.low %v205, %v219
    %v228 = vcombine.high %v205, %v219
    %v229 = vcombine.low %v212, %v226
    %v244 = vpack.c.bf16 %v191, %v120
    %v245 = vpack.c.bf16 %v192, %v121
    %v246 = vpack.c.bf16 %v193, %v122
    %v247 = vpack.c.bf16 %v194, %v123
    %v248 = vpack.c.bf16 %v227, %v156
    %v249 = vpack.c.bf16 %v228, %v157
    %v250 = vpack.c.bf16 %v229, %v158
    %v251 = vld [vmem:[#allocation2] sm:$0xff]
    %v252 = vld [vmem:[#allocation2 + $0x8] sm:$0xf]
    %v253 = vld [vmem:[#allocation2 + $0xc] sm:$0xff]
    %v254 = vld [vmem:[#allocation2 + $0x14] sm:$0xf]
    %v255 = vld [vmem:[#allocation2 + $0x18] sm:$0xff]
    %v256 = vld [vmem:[#allocation2 + $0x20] sm:$0xf]
    %v257 = vld [vmem:[#allocation2 + $0x24] sm:$0xff]
    %v258 = vld [vmem:[#allocation2 + $0x2c] sm:$0xf]
    %v259 = vld [vmem:[#allocation2 + $0x30] sm:$0xff]
    %v260 = vld [vmem:[#allocation2 + $0x38] sm:$0xf]
    %v261 = vld [vmem:[#allocation2 + $0x3c] sm:$0xff]
    %v262 = vld [vmem:[#allocation2 + $0x44] sm:$0xf]
    %v263 = vld [vmem:[#allocation2 + $0x48] sm:$0xff]
    %v264 = vld [vmem:[#allocation2 + $0x50] sm:$0xf]
    %v265 = vld [vmem:[#allocation2 + $0x54] sm:$0xff]
    %v266 = vld [vmem:[#allocation2 + $0x5c] sm:$0xf]
    %v267 = vld [vmem:[#allocation2 + $0x60] sm:$0xff]
    %v268 = vld [vmem:[#allocation2 + $0x68] sm:$0xf]
    %v269 = vld [vmem:[#allocation2 + $0x6c] sm:$0xff]
    %v270 = vld [vmem:[#allocation2 + $0x74] sm:$0xf]
    %v271 = vld [vmem:[#allocation2 + $0x78] sm:$0xff]
    %v272 = vld [vmem:[#allocation2 + $0x80] sm:$0xf]
    %v273 = vld [vmem:[#allocation2 + $0x84] sm:$0xff]
    %v274 = vld [vmem:[#allocation2 + $0x8c] sm:$0xf]
    %v275 = vld [vmem:[#allocation2 + $0x90] sm:$0xff]
    %v276 = vld [vmem:[#allocation2 + $0x98] sm:$0xf]
    %v277 = vld [vmem:[#allocation2 + $0x9c] sm:$0xff]
    %v278 = vld [vmem:[#allocation2 + $0xa4] sm:$0xf]
    %v279 = vld [vmem:[#allocation2 + $0xa8] sm:$0xff]
    %v280 = vld [vmem:[#allocation2 + $0xb0] sm:$0xf]
    %v281 = vld [vmem:[#allocation2 + $0xb4] sm:$0xff]
    %v282 = vld [vmem:[#allocation2 + $0xbc] sm:$0xf]
    %v283 = vld [vmem:[#allocation2 + $0xc0] sm:$0xff]
    %v284 = vld [vmem:[#allocation2 + $0xc8] sm:$0xf]
    %v285 = vld [vmem:[#allocation2 + $0xcc] sm:$0xff]
    %v286 = vld [vmem:[#allocation2 + $0xd4] sm:$0xf]
    %v287 = vld [vmem:[#allocation2 + $0xd8] sm:$0xff]
    %v288 = vld [vmem:[#allocation2 + $0xe0] sm:$0xf]
    %v289 = vld [vmem:[#allocation2 + $0xe4] sm:$0xff]
    %v290 = vld [vmem:[#allocation2 + $0xec] sm:$0xf]
    %v291 = vld [vmem:[#allocation2 + $0xf0] sm:$0xff]
    %v292 = vld [vmem:[#allocation2 + $0xf8] sm:$0xf]
    %v293 = vld [vmem:[#allocation2 + $0xfc] sm:$0xff]
    %v294 = vld [vmem:[#allocation2 + $0x104] sm:$0xf]
    %v295 = vld [vmem:[#allocation2 + $0x108] sm:$0xff]
    %v296 = vld [vmem:[#allocation2 + $0x110] sm:$0xf]
    %v297 = vld [vmem:[#allocation2 + $0x114] sm:$0xff]
    %v298 = vld [vmem:[#allocation2 + $0x11c] sm:$0xf]
    %v299 = vld [vmem:[#allocation2 + $0x120] sm:$0xff]
    %v300 = vld [vmem:[#allocation2 + $0x128] sm:$0xf]
    %v301 = vld [vmem:[#allocation2 + $0x12c] sm:$0xff]
    %v302 = vld [vmem:[#allocation2 + $0x134] sm:$0xf]
    %v303 = vld [vmem:[#allocation2 + $0x138] sm:$0xff]
    %v304 = vld [vmem:[#allocation2 + $0x140] sm:$0xf]
    %v305 = vld [vmem:[#allocation2 + $0x144] sm:$0xff]
    %v306 = vld [vmem:[#allocation2 + $0x14c] sm:$0xf]
    %v307 = vld [vmem:[#allocation2 + $0x150] sm:$0xff]
    %v308 = vld [vmem:[#allocation2 + $0x158] sm:$0xf]
    %v309 = vld [vmem:[#allocation2 + $0x15c] sm:$0xff]
    %v310 = vld [vmem:[#allocation2 + $0x164] sm:$0xf]
    %v311 = vld [vmem:[#allocation2 + $0x168] sm:$0xff]
    %v312 = vld [vmem:[#allocation2 + $0x170] sm:$0xf]
    %v313 = vld [vmem:[#allocation2 + $0x174] sm:$0xff]
    %v314 = vld [vmem:[#allocation2 + $0x17c] sm:$0xf]
    %v315 = vld [vmem:[#allocation2 + $0x180] sm:$0xff]
    %v316 = vld [vmem:[#allocation2 + $0x188] sm:$0xf]
    %v317 = vld [vmem:[#allocation2 + $0x18c] sm:$0xff]
    %v318 = vld [vmem:[#allocation2 + $0x194] sm:$0xf]
    %v319 = vld [vmem:[#allocation2 + $0x198] sm:$0xff]
    %v320 = vld [vmem:[#allocation2 + $0x1a0] sm:$0xf]
    %v321 = vld [vmem:[#allocation2 + $0x1a4] sm:$0xff]
    %v322 = vld [vmem:[#allocation2 + $0x1ac] sm:$0xf]
    %v323 = vld [vmem:[#allocation2 + $0x1b0] sm:$0xff]
    %v324 = vld [vmem:[#allocation2 + $0x1b8] sm:$0xf]
    %v325 = vld [vmem:[#allocation2 + $0x1bc] sm:$0xff]
    %v326 = vld [vmem:[#allocation2 + $0x1c4] sm:$0xf]
    %v327 = vld [vmem:[#allocation2 + $0x1c8] sm:$0xff]
    %v328 = vld [vmem:[#allocation2 + $0x1d0] sm:$0xf]
    %v329 = vld [vmem:[#allocation2 + $0x1d4] sm:$0xff]
    %v330 = vld [vmem:[#allocation2 + $0x1dc] sm:$0xf]
    %v331 = vld [vmem:[#allocation2 + $0x1e0] sm:$0xff]
    %v332 = vld [vmem:[#allocation2 + $0x1e8] sm:$0xf]
    %v333 = vld [vmem:[#allocation2 + $0x1ec] sm:$0xff]
    %v334 = vld [vmem:[#allocation2 + $0x1f4] sm:$0xf]
    %v335 = vld [vmem:[#allocation2 + $0x1f8] sm:$0xff]
    %v336 = vld [vmem:[#allocation2 + $0x200] sm:$0xf]
    %v337 = vld [vmem:[#allocation2 + $0x204] sm:$0xff]
    %v338 = vld [vmem:[#allocation2 + $0x20c] sm:$0xf]
    %v339 = vld [vmem:[#allocation2 + $0x210] sm:$0xff]
    %v340 = vld [vmem:[#allocation2 + $0x218] sm:$0xf]
    %v341 = vld [vmem:[#allocation2 + $0x21c] sm:$0xff]
    %v342 = vld [vmem:[#allocation2 + $0x224] sm:$0xf]
    %v343 = vld [vmem:[#allocation2 + $0x228] sm:$0xff]
    %v344 = vld [vmem:[#allocation2 + $0x230] sm:$0xf]
    %v345 = vld [vmem:[#allocation2 + $0x234] sm:$0xff]
    %v346 = vld [vmem:[#allocation2 + $0x23c] sm:$0xf]
    %v347 = vld [vmem:[#allocation2 + $0x240] sm:$0xff]
    %v348 = vld [vmem:[#allocation2 + $0x248] sm:$0xf]
    %v349 = vld [vmem:[#allocation2 + $0x24c] sm:$0xff]
    %v350 = vld [vmem:[#allocation2 + $0x254] sm:$0xf]
    %v351 = vld [vmem:[#allocation2 + $0x258] sm:$0xff]
    %v352 = vld [vmem:[#allocation2 + $0x260] sm:$0xf]
    %v353 = vld [vmem:[#allocation2 + $0x264] sm:$0xff]
    %v354 = vld [vmem:[#allocation2 + $0x26c] sm:$0xf]
    %v355 = vld [vmem:[#allocation2 + $0x270] sm:$0xff]
    %v356 = vld [vmem:[#allocation2 + $0x278] sm:$0xf]
    %v357 = vld [vmem:[#allocation2 + $0x27c] sm:$0xff]
    %v358 = vld [vmem:[#allocation2 + $0x284] sm:$0xf]
    %v359 = vld [vmem:[#allocation2 + $0x288] sm:$0xff]
    %v360 = vld [vmem:[#allocation2 + $0x290] sm:$0xf]
    %v361 = vld [vmem:[#allocation2 + $0x294] sm:$0xff]
    %v362 = vld [vmem:[#allocation2 + $0x29c] sm:$0xf]
    %v363 = vld [vmem:[#allocation2 + $0x2a0] sm:$0xff]
    %v364 = vld [vmem:[#allocation2 + $0x2a8] sm:$0xf]
    %v365 = vld [vmem:[#allocation2 + $0x2ac] sm:$0xff]
    %v366 = vld [vmem:[#allocation2 + $0x2b4] sm:$0xf]
    %v367 = vld [vmem:[#allocation2 + $0x2b8] sm:$0xff]
    %v368 = vld [vmem:[#allocation2 + $0x2c0] sm:$0xf]
    %v369 = vld [vmem:[#allocation2 + $0x2c4] sm:$0xff]
    %v370 = vld [vmem:[#allocation2 + $0x2cc] sm:$0xf]
    %v371 = vld [vmem:[#allocation2 + $0x2d0] sm:$0xff]
    %v372 = vld [vmem:[#allocation2 + $0x2d8] sm:$0xf]
    %v373 = vld [vmem:[#allocation2 + $0x2dc] sm:$0xff]
    %v374 = vld [vmem:[#allocation2 + $0x2e4] sm:$0xf]
    %v375 = vld [vmem:[#allocation2 + $0x2e8] sm:$0xff]
    %v376 = vld [vmem:[#allocation2 + $0x2f0] sm:$0xf]
    %v377 = vld [vmem:[#allocation2 + $0x2f4] sm:$0xff]
    %v378 = vld [vmem:[#allocation2 + $0x2fc] sm:$0xf]
    %v379 = vld [vmem:[#allocation2 + $0x300] sm:$0xff]
    %v380 = vld [vmem:[#allocation2 + $0x308] sm:$0xf]
    %v381 = vld [vmem:[#allocation2 + $0x30c] sm:$0xff]
    %v382 = vld [vmem:[#allocation2 + $0x314] sm:$0xf]
    %v383 = vld [vmem:[#allocation2 + $0x318] sm:$0xff]
    %v384 = vld [vmem:[#allocation2 + $0x320] sm:$0xf]
    %v385 = vld [vmem:[#allocation2 + $0x324] sm:$0xff]
    %v386 = vld [vmem:[#allocation2 + $0x32c] sm:$0xf]
    %v387 = vld [vmem:[#allocation2 + $0x330] sm:$0xff]
    %v388 = vld [vmem:[#allocation2 + $0x338] sm:$0xf]
    %v389 = vld [vmem:[#allocation2 + $0x33c] sm:$0xff]
    %v390 = vld [vmem:[#allocation2 + $0x344] sm:$0xf]
    %v391 = vld [vmem:[#allocation2 + $0x348] sm:$0xff]
    %v392 = vld [vmem:[#allocation2 + $0x350] sm:$0xf]
    %v393 = vld [vmem:[#allocation2 + $0x354] sm:$0xff]
    %v394 = vld [vmem:[#allocation2 + $0x35c] sm:$0xf]
    %v395 = vld [vmem:[#allocation2 + $0x360] sm:$0xff]
    %v396 = vld [vmem:[#allocation2 + $0x368] sm:$0xf]
    %v397 = vld [vmem:[#allocation2 + $0x36c] sm:$0xff]
    %v398 = vld [vmem:[#allocation2 + $0x374] sm:$0xf]
    %v399 = vld [vmem:[#allocation2 + $0x378] sm:$0xff]
    %v400 = vld [vmem:[#allocation2 + $0x380] sm:$0xf]
    %v401 = vld [vmem:[#allocation2 + $0x384] sm:$0xff]
    %v402 = vld [vmem:[#allocation2 + $0x38c] sm:$0xf]
    %v403 = vld [vmem:[#allocation2 + $0x390] sm:$0xff]
    %v404 = vld [vmem:[#allocation2 + $0x398] sm:$0xf]
    %v405 = vld [vmem:[#allocation2 + $0x39c] sm:$0xff]
    %v406 = vld [vmem:[#allocation2 + $0x3a4] sm:$0xf]
    %v407 = vld [vmem:[#allocation2 + $0x3a8] sm:$0xff]
    %v408 = vld [vmem:[#allocation2 + $0x3b0] sm:$0xf]
    %v409 = vld [vmem:[#allocation2 + $0x3b4] sm:$0xff]
    %v410 = vld [vmem:[#allocation2 + $0x3bc] sm:$0xf]
    %v411 = vld [vmem:[#allocation2 + $0x3c0] sm:$0xff]
    %v412 = vld [vmem:[#allocation2 + $0x3c8] sm:$0xf]
    %v413 = vld [vmem:[#allocation2 + $0x3cc] sm:$0xff]
    %v414 = vld [vmem:[#allocation2 + $0x3d4] sm:$0xf]
    %v415 = vld [vmem:[#allocation2 + $0x3d8] sm:$0xff]
    %v416 = vld [vmem:[#allocation2 + $0x3e0] sm:$0xf]
    %v417 = vld [vmem:[#allocation2 + $0x3e4] sm:$0xff]
    %v418 = vld [vmem:[#allocation2 + $0x3ec] sm:$0xf]
    %v419 = vld [vmem:[#allocation2 + $0x3f0] sm:$0xff]
    %v420 = vld [vmem:[#allocation2 + $0x3f8] sm:$0xf]
    %v421 = vld [vmem:[#allocation2 + $0x3fc] sm:$0xff]
    %v422 = vld [vmem:[#allocation2 + $0x404] sm:$0xf]
    %v423 = vld [vmem:[#allocation2 + $0x408] sm:$0xff]
    %v424 = vld [vmem:[#allocation2 + $0x410] sm:$0xf]
    %v425 = vld [vmem:[#allocation2 + $0x414] sm:$0xff]
    %v426 = vld [vmem:[#allocation2 + $0x41c] sm:$0xf]
    %v427 = vld [vmem:[#allocation2 + $0x420] sm:$0xff]
    %v428 = vld [vmem:[#allocation2 + $0x428] sm:$0xf]
    %v429 = vld [vmem:[#allocation2 + $0x42c] sm:$0xff]
    %v430 = vld [vmem:[#allocation2 + $0x434] sm:$0xf]
    %v431 = vld [vmem:[#allocation2 + $0x438] sm:$0xff]
    %v432 = vld [vmem:[#allocation2 + $0x440] sm:$0xf]
    %v433 = vld [vmem:[#allocation2 + $0x444] sm:$0xff]
    %v434 = vld [vmem:[#allocation2 + $0x44c] sm:$0xf]
    %v435 = vld [vmem:[#allocation2 + $0x450] sm:$0xff]
    %v436 = vld [vmem:[#allocation2 + $0x458] sm:$0xf]
    %v437 = vld [vmem:[#allocation2 + $0x45c] sm:$0xff]
    %v438 = vld [vmem:[#allocation2 + $0x464] sm:$0xf]
    %v439 = vld [vmem:[#allocation2 + $0x468] sm:$0xff]
    %v440 = vld [vmem:[#allocation2 + $0x470] sm:$0xf]
    %v441 = vld [vmem:[#allocation2 + $0x474] sm:$0xff]
    %v442 = vld [vmem:[#allocation2 + $0x47c] sm:$0xf]
    %v443 = vld [vmem:[#allocation2 + $0x480] sm:$0xff]
    %v444 = vld [vmem:[#allocation2 + $0x488] sm:$0xf]
    %v445 = vld [vmem:[#allocation2 + $0x48c] sm:$0xff]
    %v446 = vld [vmem:[#allocation2 + $0x494] sm:$0xf]
    %v447 = vld [vmem:[%s2] sm:$0x7]
    %v449 = vlaneseq
    %v450 = vshrl.u32 %v449, 7
    %v451 = vsub.s32 0, %v450
    %v452 = vrot.slane %v447, %v451
    %v453 = vlaneseq
    %v454 = vshrl.u32 %v453, 7
    %v455 = vsub.s32 1, %v454
    %v456 = vrot.slane %v447, %v455
    %v457 = vlaneseq
    %v458 = vshrl.u32 %v457, 7
    %v459 = vsub.s32 2, %v458
    %v460 = vrot.slane %v447, %v459
    %v660 = vunpack.c.l.b16 %v251
    %v661 = vunpack.c.h.b16 %v251
    %v662 = vunpack.c.l.b16 %v252
    %v663 = vunpack.c.l.b16 %v253
    %v664 = vunpack.c.h.b16 %v253
    %v665 = vunpack.c.l.b16 %v254
    %v666 = vunpack.c.l.b16 %v255
    %v667 = vunpack.c.h.b16 %v255
    %v668 = vunpack.c.l.b16 %v256
    %v669 = vunpack.c.l.b16 %v257
    %v670 = vunpack.c.h.b16 %v257
    %v671 = vunpack.c.l.b16 %v258
    %v672 = vunpack.c.l.b16 %v259
    %v673 = vunpack.c.h.b16 %v259
    %v674 = vunpack.c.l.b16 %v260
    %v675 = vunpack.c.l.b16 %v261
    %v676 = vunpack.c.h.b16 %v261
    %v677 = vunpack.c.l.b16 %v262
    %v678 = vunpack.c.l.b16 %v263
    %v679 = vunpack.c.h.b16 %v263
    %v680 = vunpack.c.l.b16 %v264
    %v681 = vunpack.c.l.b16 %v265
    %v682 = vunpack.c.h.b16 %v265
    %v683 = vunpack.c.l.b16 %v266
    %v684 = vunpack.c.l.b16 %v267
    %v685 = vunpack.c.h.b16 %v267
    %v686 = vunpack.c.l.b16 %v268
    %v687 = vunpack.c.l.b16 %v269
    %v688 = vunpack.c.h.b16 %v269
    %v689 = vunpack.c.l.b16 %v270
    %v690 = vunpack.c.l.b16 %v271
    %v691 = vunpack.c.h.b16 %v271
    %v692 = vunpack.c.l.b16 %v272
    %v693 = vunpack.c.l.b16 %v273
    %v694 = vunpack.c.h.b16 %v273
    %v695 = vunpack.c.l.b16 %v274
    %v696 = vunpack.c.l.b16 %v275
    %v697 = vunpack.c.h.b16 %v275
    %v698 = vunpack.c.l.b16 %v276
    %v699 = vunpack.c.l.b16 %v277
    %v700 = vunpack.c.h.b16 %v277
    %v701 = vunpack.c.l.b16 %v278
    %v702 = vunpack.c.l.b16 %v279
    %v703 = vunpack.c.h.b16 %v279
    %v704 = vunpack.c.l.b16 %v280
    %v705 = vunpack.c.l.b16 %v281
    %v706 = vunpack.c.h.b16 %v281
    %v707 = vunpack.c.l.b16 %v282
    %v708 = vunpack.c.l.b16 %v283
    %v709 = vunpack.c.h.b16 %v283
    %v710 = vunpack.c.l.b16 %v284
    %v711 = vunpack.c.l.b16 %v285
    %v712 = vunpack.c.h.b16 %v285
    %v713 = vunpack.c.l.b16 %v286
    %v714 = vunpack.c.l.b16 %v287
    %v715 = vunpack.c.h.b16 %v287
    %v716 = vunpack.c.l.b16 %v288
    %v717 = vunpack.c.l.b16 %v289
    %v718 = vunpack.c.h.b16 %v289
    %v719 = vunpack.c.l.b16 %v290
    %v720 = vunpack.c.l.b16 %v291
    %v721 = vunpack.c.h.b16 %v291
    %v722 = vunpack.c.l.b16 %v292
    %v723 = vunpack.c.l.b16 %v293
    %v724 = vunpack.c.h.b16 %v293
    %v725 = vunpack.c.l.b16 %v294
    %v726 = vunpack.c.l.b16 %v295
    %v727 = vunpack.c.h.b16 %v295
    %v728 = vunpack.c.l.b16 %v296
    %v729 = vunpack.c.l.b16 %v297
    %v730 = vunpack.c.h.b16 %v297
    %v731 = vunpack.c.l.b16 %v298
    %v732 = vunpack.c.l.b16 %v299
    %v733 = vunpack.c.h.b16 %v299
    %v734 = vunpack.c.l.b16 %v300
    %v735 = vunpack.c.l.b16 %v301
    %v736 = vunpack.c.h.b16 %v301
    %v737 = vunpack.c.l.b16 %v302
    %v738 = vunpack.c.l.b16 %v303
    %v739 = vunpack.c.h.b16 %v303
    %v740 = vunpack.c.l.b16 %v304
    %v741 = vunpack.c.l.b16 %v305
    %v742 = vunpack.c.h.b16 %v305
    %v743 = vunpack.c.l.b16 %v306
    %v744 = vunpack.c.l.b16 %v307
    %v745 = vunpack.c.h.b16 %v307
    %v746 = vunpack.c.l.b16 %v308
    %v747 = vunpack.c.l.b16 %v309
    %v748 = vunpack.c.h.b16 %v309
    %v749 = vunpack.c.l.b16 %v310
    %v750 = vunpack.c.l.b16 %v311
    %v751 = vunpack.c.h.b16 %v311
    %v752 = vunpack.c.l.b16 %v312
    %v753 = vunpack.c.l.b16 %v313
    %v754 = vunpack.c.h.b16 %v313
    %v755 = vunpack.c.l.b16 %v314
    %v756 = vunpack.c.l.b16 %v315
    %v757 = vunpack.c.h.b16 %v315
    %v758 = vunpack.c.l.b16 %v316
    %v759 = vunpack.c.l.b16 %v317
    %v760 = vunpack.c.h.b16 %v317
    %v761 = vunpack.c.l.b16 %v318
    %v762 = vunpack.c.l.b16 %v319
    %v763 = vunpack.c.h.b16 %v319
    %v764 = vunpack.c.l.b16 %v320
    %v765 = vunpack.c.l.b16 %v321
    %v766 = vunpack.c.h.b16 %v321
    %v767 = vunpack.c.l.b16 %v322
    %v768 = vunpack.c.l.b16 %v323
    %v769 = vunpack.c.h.b16 %v323
    %v770 = vunpack.c.l.b16 %v324
    %v771 = vunpack.c.l.b16 %v325
    %v772 = vunpack.c.h.b16 %v325
    %v773 = vunpack.c.l.b16 %v326
    %v774 = vunpack.c.l.b16 %v327
    %v775 = vunpack.c.h.b16 %v327
    %v776 = vunpack.c.l.b16 %v328
    %v777 = vunpack.c.l.b16 %v329
    %v778 = vunpack.c.h.b16 %v329
    %v779 = vunpack.c.l.b16 %v330
    %v780 = vunpack.c.l.b16 %v331
    %v781 = vunpack.c.h.b16 %v331
    %v782 = vunpack.c.l.b16 %v332
    %v783 = vunpack.c.l.b16 %v333
    %v784 = vunpack.c.h.b16 %v333
    %v785 = vunpack.c.l.b16 %v334
    %v786 = vunpack.c.l.b16 %v335
    %v787 = vunpack.c.h.b16 %v335
    %v788 = vunpack.c.l.b16 %v336
    %v789 = vunpack.c.l.b16 %v337
    %v790 = vunpack.c.h.b16 %v337
    %v791 = vunpack.c.l.b16 %v338
    %v792 = vunpack.c.l.b16 %v339
    %v793 = vunpack.c.h.b16 %v339
    %v794 = vunpack.c.l.b16 %v340
    %v795 = vunpack.c.l.b16 %v341
    %v796 = vunpack.c.h.b16 %v341
    %v797 = vunpack.c.l.b16 %v342
    %v798 = vunpack.c.l.b16 %v343
    %v799 = vunpack.c.h.b16 %v343
    %v800 = vunpack.c.l.b16 %v344
    %v801 = vunpack.c.l.b16 %v345
    %v802 = vunpack.c.h.b16 %v345
    %v803 = vunpack.c.l.b16 %v346
    %v804 = vunpack.c.l.b16 %v347
    %v805 = vunpack.c.h.b16 %v347
    %v806 = vunpack.c.l.b16 %v348
    %v807 = vunpack.c.l.b16 %v349
    %v808 = vunpack.c.h.b16 %v349
    %v809 = vunpack.c.l.b16 %v350
    %v810 = vunpack.c.l.b16 %v351
    %v811 = vunpack.c.h.b16 %v351
    %v812 = vunpack.c.l.b16 %v352
    %v813 = vunpack.c.l.b16 %v353
    %v814 = vunpack.c.h.b16 %v353
    %v815 = vunpack.c.l.b16 %v354
    %v816 = vunpack.c.l.b16 %v355
    %v817 = vunpack.c.h.b16 %v355
    %v818 = vunpack.c.l.b16 %v356
    %v819 = vunpack.c.l.b16 %v357
    %v820 = vunpack.c.h.b16 %v357
    %v821 = vunpack.c.l.b16 %v358
    %v822 = vunpack.c.l.b16 %v359
    %v823 = vunpack.c.h.b16 %v359
    %v824 = vunpack.c.l.b16 %v360
    %v825 = vunpack.c.l.b16 %v361
    %v826 = vunpack.c.h.b16 %v361
    %v827 = vunpack.c.l.b16 %v362
    %v828 = vunpack.c.l.b16 %v363
    %v829 = vunpack.c.h.b16 %v363
    %v830 = vunpack.c.l.b16 %v364
    %v831 = vunpack.c.l.b16 %v365
    %v832 = vunpack.c.h.b16 %v365
    %v833 = vunpack.c.l.b16 %v366
    %v834 = vunpack.c.l.b16 %v367
    %v835 = vunpack.c.h.b16 %v367
    %v836 = vunpack.c.l.b16 %v368
    %v837 = vunpack.c.l.b16 %v369
    %v838 = vunpack.c.h.b16 %v369
    %v839 = vunpack.c.l.b16 %v370
    %v840 = vunpack.c.l.b16 %v371
    %v841 = vunpack.c.h.b16 %v371
    %v842 = vunpack.c.l.b16 %v372
    %v843 = vunpack.c.l.b16 %v373
    %v844 = vunpack.c.h.b16 %v373
    %v845 = vunpack.c.l.b16 %v374
    %v846 = vunpack.c.l.b16 %v375
    %v847 = vunpack.c.h.b16 %v375
    %v848 = vunpack.c.l.b16 %v376
    %v849 = vunpack.c.l.b16 %v377
    %v850 = vunpack.c.h.b16 %v377
    %v851 = vunpack.c.l.b16 %v378
    %v852 = vunpack.c.l.b16 %v379
    %v853 = vunpack.c.h.b16 %v379
    %v854 = vunpack.c.l.b16 %v380
    %v855 = vunpack.c.l.b16 %v381
    %v856 = vunpack.c.h.b16 %v381
    %v857 = vunpack.c.l.b16 %v382
    %v858 = vunpack.c.l.b16 %v383
    %v859 = vunpack.c.h.b16 %v383
    %v860 = vunpack.c.l.b16 %v384
    %v861 = vunpack.c.l.b16 %v385
    %v862 = vunpack.c.h.b16 %v385
    %v863 = vunpack.c.l.b16 %v386
    %v864 = vunpack.c.l.b16 %v387
    %v865 = vunpack.c.h.b16 %v387
    %v866 = vunpack.c.l.b16 %v388
    %v867 = vunpack.c.l.b16 %v389
    %v868 = vunpack.c.h.b16 %v389
    %v869 = vunpack.c.l.b16 %v390
    %v870 = vunpack.c.l.b16 %v391
    %v871 = vunpack.c.h.b16 %v391
    %v872 = vunpack.c.l.b16 %v392
    %v873 = vunpack.c.l.b16 %v393
    %v874 = vunpack.c.h.b16 %v393
    %v875 = vunpack.c.l.b16 %v394
    %v876 = vunpack.c.l.b16 %v395
    %v877 = vunpack.c.h.b16 %v395
    %v878 = vunpack.c.l.b16 %v396
    %v879 = vunpack.c.l.b16 %v397
    %v880 = vunpack.c.h.b16 %v397
    %v881 = vunpack.c.l.b16 %v398
    %v882 = vunpack.c.l.b16 %v399
    %v883 = vunpack.c.h.b16 %v399
    %v884 = vunpack.c.l.b16 %v400
    %v885 = vunpack.c.l.b16 %v401
    %v886 = vunpack.c.h.b16 %v401
    %v887 = vunpack.c.l.b16 %v402
    %v888 = vunpack.c.l.b16 %v403
    %v889 = vunpack.c.h.b16 %v403
    %v890 = vunpack.c.l.b16 %v404
    %v891 = vunpack.c.l.b16 %v405
    %v892 = vunpack.c.h.b16 %v405
    %v893 = vunpack.c.l.b16 %v406
    %v894 = vunpack.c.l.b16 %v407
    %v895 = vunpack.c.h.b16 %v407
    %v896 = vunpack.c.l.b16 %v408
    %v897 = vunpack.c.l.b16 %v409
    %v898 = vunpack.c.h.b16 %v409
    %v899 = vunpack.c.l.b16 %v410
    %v900 = vunpack.c.l.b16 %v411
    %v901 = vunpack.c.h.b16 %v411
    %v902 = vunpack.c.l.b16 %v412
    %v903 = vunpack.c.l.b16 %v413
    %v904 = vunpack.c.h.b16 %v413
    %v905 = vunpack.c.l.b16 %v414
    %v906 = vunpack.c.l.b16 %v415
    %v907 = vunpack.c.h.b16 %v415
    %v908 = vunpack.c.l.b16 %v416
    %v909 = vunpack.c.l.b16 %v417
    %v910 = vunpack.c.h.b16 %v417
    %v911 = vunpack.c.l.b16 %v418
    %v912 = vunpack.c.l.b16 %v419
    %v913 = vunpack.c.h.b16 %v419
    %v914 = vunpack.c.l.b16 %v420
    %v915 = vunpack.c.l.b16 %v421
    %v916 = vunpack.c.h.b16 %v421
    %v917 = vunpack.c.l.b16 %v422
    %v918 = vunpack.c.l.b16 %v423
    %v919 = vunpack.c.h.b16 %v423
    %v920 = vunpack.c.l.b16 %v424
    %v921 = vunpack.c.l.b16 %v425
    %v922 = vunpack.c.h.b16 %v425
    %v923 = vunpack.c.l.b16 %v426
    %v924 = vunpack.c.l.b16 %v427
    %v925 = vunpack.c.h.b16 %v427
    %v926 = vunpack.c.l.b16 %v428
    %v927 = vunpack.c.l.b16 %v429
    %v928 = vunpack.c.h.b16 %v429
    %v929 = vunpack.c.l.b16 %v430
    %v930 = vunpack.c.l.b16 %v431
    %v931 = vunpack.c.h.b16 %v431
    %v932 = vunpack.c.l.b16 %v432
    %v933 = vunpack.c.l.b16 %v433
    %v934 = vunpack.c.h.b16 %v433
    %v935 = vunpack.c.l.b16 %v434
    %v936 = vunpack.c.l.b16 %v435
    %v937 = vunpack.c.h.b16 %v435
    %v938 = vunpack.c.l.b16 %v436
    %v939 = vunpack.c.l.b16 %v437
    %v940 = vunpack.c.h.b16 %v437
    %v941 = vunpack.c.l.b16 %v438
    %v942 = vunpack.c.l.b16 %v439
    %v943 = vunpack.c.h.b16 %v439
    %v944 = vunpack.c.l.b16 %v440
    %v945 = vunpack.c.l.b16 %v441
    %v946 = vunpack.c.h.b16 %v441
    %v947 = vunpack.c.l.b16 %v442
    %v948 = vunpack.c.l.b16 %v443
    %v949 = vunpack.c.h.b16 %v443
    %v950 = vunpack.c.l.b16 %v444
    %v951 = vunpack.c.l.b16 %v445
    %v952 = vunpack.c.h.b16 %v445
    %v953 = vunpack.c.l.b16 %v446
    %v954 = vpack.c.b16 %v663, %v660
    %v955 = vpack.c.b16 %v664, %v661
    %v956 = vpack.c.b16 %v665, %v662
    %v957 = vpack.c.b16 %v669, %v666
    %v958 = vpack.c.b16 %v670, %v667
    %v959 = vpack.c.b16 %v671, %v668
    %v960 = vpack.c.b16 %v675, %v672
    %v961 = vpack.c.b16 %v676, %v673
    %v962 = vpack.c.b16 %v677, %v674
    %v963 = vpack.c.b16 %v681, %v678
    %v964 = vpack.c.b16 %v682, %v679
    %v965 = vpack.c.b16 %v683, %v680
    %v966 = vpack.c.b16 %v687, %v684
    %v967 = vpack.c.b16 %v688, %v685
    %v968 = vpack.c.b16 %v689, %v686
    %v969 = vpack.c.b16 %v693, %v690
    %v970 = vpack.c.b16 %v694, %v691
    %v971 = vpack.c.b16 %v695, %v692
    %v972 = vpack.c.b16 %v699, %v696
    %v973 = vpack.c.b16 %v700, %v697
    %v974 = vpack.c.b16 %v701, %v698
    %v975 = vpack.c.b16 %v705, %v702
    %v976 = vpack.c.b16 %v706, %v703
    %v977 = vpack.c.b16 %v707, %v704
    %v978 = vpack.c.b16 %v711, %v708
    %v979 = vpack.c.b16 %v712, %v709
    %v980 = vpack.c.b16 %v713, %v710
    %v981 = vpack.c.b16 %v717, %v714
    %v982 = vpack.c.b16 %v718, %v715
    %v983 = vpack.c.b16 %v719, %v716
    %v984 = vpack.c.b16 %v723, %v720
    %v985 = vpack.c.b16 %v724, %v721
    %v986 = vpack.c.b16 %v725, %v722
    %v987 = vpack.c.b16 %v729, %v726
    %v988 = vpack.c.b16 %v730, %v727
    %v989 = vpack.c.b16 %v731, %v728
    %v990 = vpack.c.b16 %v735, %v732
    %v991 = vpack.c.b16 %v736, %v733
    %v992 = vpack.c.b16 %v737, %v734
    %v993 = vpack.c.b16 %v741, %v738
    %v994 = vpack.c.b16 %v742, %v739
    %v995 = vpack.c.b16 %v743, %v740
    %v996 = vpack.c.b16 %v747, %v744
    %v997 = vpack.c.b16 %v748, %v745
    %v998 = vpack.c.b16 %v749, %v746
    %v999 = vpack.c.b16 %v753, %v750
    %v1000 = vpack.c.b16 %v754, %v751
    %v1001 = vpack.c.b16 %v755, %v752
    %v1002 = vpack.c.b16 %v759, %v756
    %v1003 = vpack.c.b16 %v760, %v757
    %v1004 = vpack.c.b16 %v761, %v758
    %v1005 = vpack.c.b16 %v765, %v762
    %v1006 = vpack.c.b16 %v766, %v763
    %v1007 = vpack.c.b16 %v767, %v764
    %v1008 = vpack.c.b16 %v771, %v768
    %v1009 = vpack.c.b16 %v772, %v769
    %v1010 = vpack.c.b16 %v773, %v770
    %v1011 = vpack.c.b16 %v777, %v774
    %v1012 = vpack.c.b16 %v778, %v775
    %v1013 = vpack.c.b16 %v779, %v776
    %v1014 = vpack.c.b16 %v783, %v780
    %v1015 = vpack.c.b16 %v784, %v781
    %v1016 = vpack.c.b16 %v785, %v782
    %v1017 = vpack.c.b16 %v789, %v786
    %v1018 = vpack.c.b16 %v790, %v787
    %v1019 = vpack.c.b16 %v791, %v788
    %v1020 = vpack.c.b16 %v795, %v792
    %v1021 = vpack.c.b16 %v796, %v793
    %v1022 = vpack.c.b16 %v797, %v794
    %v1023 = vpack.c.b16 %v801, %v798
    %v1024 = vpack.c.b16 %v802, %v799
    %v1025 = vpack.c.b16 %v803, %v800
    %v1026 = vpack.c.b16 %v807, %v804
    %v1027 = vpack.c.b16 %v808, %v805
    %v1028 = vpack.c.b16 %v809, %v806
    %v1029 = vpack.c.b16 %v813, %v810
    %v1030 = vpack.c.b16 %v814, %v811
    %v1031 = vpack.c.b16 %v815, %v812
    %v1032 = vpack.c.b16 %v819, %v816
    %v1033 = vpack.c.b16 %v820, %v817
    %v1034 = vpack.c.b16 %v821, %v818
    %v1035 = vpack.c.b16 %v825, %v822
    %v1036 = vpack.c.b16 %v826, %v823
    %v1037 = vpack.c.b16 %v827, %v824
    %v1038 = vpack.c.b16 %v831, %v828
    %v1039 = vpack.c.b16 %v832, %v829
    %v1040 = vpack.c.b16 %v833, %v830
    %v1041 = vpack.c.b16 %v837, %v834
    %v1042 = vpack.c.b16 %v838, %v835
    %v1043 = vpack.c.b16 %v839, %v836
    %v1044 = vpack.c.b16 %v843, %v840
    %v1045 = vpack.c.b16 %v844, %v841
    %v1046 = vpack.c.b16 %v845, %v842
    %v1047 = vpack.c.b16 %v849, %v846
    %v1048 = vpack.c.b16 %v850, %v847
    %v1049 = vpack.c.b16 %v851, %v848
    %v1050 = vpack.c.b16 %v855, %v852
    %v1051 = vpack.c.b16 %v856, %v853
    %v1052 = vpack.c.b16 %v857, %v854
    %v1053 = vpack.c.b16 %v861, %v858
    %v1054 = vpack.c.b16 %v862, %v859
    %v1055 = vpack.c.b16 %v863, %v860
    %v1056 = vpack.c.b16 %v867, %v864
    %v1057 = vpack.c.b16 %v868, %v865
    %v1058 = vpack.c.b16 %v869, %v866
    %v1059 = vpack.c.b16 %v873, %v870
    %v1060 = vpack.c.b16 %v874, %v871
    %v1061 = vpack.c.b16 %v875, %v872
    %v1062 = vpack.c.b16 %v879, %v876
    %v1063 = vpack.c.b16 %v880, %v877
    %v1064 = vpack.c.b16 %v881, %v878
    %v1065 = vpack.c.b16 %v885, %v882
    %v1066 = vpack.c.b16 %v886, %v883
    %v1067 = vpack.c.b16 %v887, %v884
    %v1068 = vpack.c.b16 %v891, %v888
    %v1069 = vpack.c.b16 %v892, %v889
    %v1070 = vpack.c.b16 %v893, %v890
    %v1071 = vpack.c.b16 %v897, %v894
    %v1072 = vpack.c.b16 %v898, %v895
    %v1073 = vpack.c.b16 %v899, %v896
    %v1074 = vpack.c.b16 %v903, %v900
    %v1075 = vpack.c.b16 %v904, %v901
    %v1076 = vpack.c.b16 %v905, %v902
    %v1077 = vpack.c.b16 %v909, %v906
    %v1078 = vpack.c.b16 %v910, %v907
    %v1079 = vpack.c.b16 %v911, %v908
    %v1080 = vpack.c.b16 %v915, %v912
    %v1081 = vpack.c.b16 %v916, %v913
    %v1082 = vpack.c.b16 %v917, %v914
    %v1083 = vpack.c.b16 %v921, %v918
    %v1084 = vpack.c.b16 %v922, %v919
    %v1085 = vpack.c.b16 %v923, %v920
    %v1086 = vpack.c.b16 %v927, %v924
    %v1087 = vpack.c.b16 %v928, %v925
    %v1088 = vpack.c.b16 %v929, %v926
    %v1089 = vpack.c.b16 %v933, %v930
    %v1090 = vpack.c.b16 %v934, %v931
    %v1091 = vpack.c.b16 %v935, %v932
    %v1092 = vpack.c.b16 %v939, %v936
    %v1093 = vpack.c.b16 %v940, %v937
    %v1094 = vpack.c.b16 %v941, %v938
    %v1095 = vpack.c.b16 %v945, %v942
    %v1096 = vpack.c.b16 %v946, %v943
    %v1097 = vpack.c.b16 %v947, %v944
    %v1098 = vpack.c.b16 %v951, %v948
    %v1099 = vpack.c.b16 %v952, %v949
    %v1100 = vpack.c.b16 %v953, %v950
    %vm1248 = vcmask 130048
    %v1250 = vsel %vm1248, %v250, 0
    %1252 = vmatprep.subr.bf16.mxu0 %v955
    %1253 = vmatpush1.bf16.msra.mxu0 %v954
    %1254 = vmatprep.subr.bf16.mxu0 %v958
    %1255 = vmatpush1.bf16.msra.mxu0 %v957
    %1256 = vmatprep.subr.bf16.mxu0 %v961
    %1257 = vmatpush1.bf16.msra.mxu0 %v960
    %1258 = vmatprep.subr.bf16.mxu0 %v964
    %1259 = vmatpush1.bf16.msra.mxu0 %v963
    %1260 = vmatprep.subr.bf16.mxu0 %v967
    %1261 = vmatpush1.bf16.msra.mxu0 %v966
    %1262 = vmatprep.subr.bf16.mxu0 %v970
    %1263 = vmatpush1.bf16.msra.mxu0 %v969
    %1264 = vmatprep.subr.bf16.mxu0 %v973
    %1265 = vmatpush1.bf16.msra.mxu0 %v972
    %1266 = vmatprep.subr.bf16.mxu0 %v976
    %1267 = vmatpush1.bf16.msra.mxu0 %v975
    %1268 = vmatprep.subr.bf16.mxu0 %v979
    %1269 = vmatpush1.bf16.msra.mxu0 %v978
    %1270 = vmatprep.subr.bf16.mxu0 %v982
    %1271 = vmatpush1.bf16.msra.mxu0 %v981
    %1272 = vmatprep.subr.bf16.mxu0 %v985
    %1273 = vmatpush1.bf16.msra.mxu0 %v984
    %1274 = vmatprep.subr.bf16.mxu0 %v988
    %1275 = vmatpush1.bf16.msra.mxu0 %v987
    %1276 = vmatprep.subr.bf16.mxu0 %v991
    %1277 = vmatpush1.bf16.msra.mxu0 %v990
    %1278 = vmatprep.subr.bf16.mxu0 %v994
    %1279 = vmatpush1.bf16.msra.mxu0 %v993
    %1280 = vmatprep.subr.bf16.mxu0 %v997
    %1281 = vmatpush1.bf16.msra.mxu0 %v996
    %1282 = vmatprep.subr.bf16.mxu0 %v1000
    %1283 = vmatpush1.bf16.msra.mxu0 %v999
    %1284 = vmatprep.mubr.bf16.mxu0 %v245
    %1285 = vmatmul.mubr.bf16.gmra.mrb[0].mxu0 %v244
    %v1286 = vpop.f32.mrb[0].mxu0
    %v1287 = vadd.f32 %v452, %v1286
    %v1288 = vpop.f32.mrb[0].mxu0
    %v1289 = vadd.f32 %v456, %v1288
    %v1290 = vpop.f32.mrb[0].mxu0
    %v1291 = vadd.f32 %v452, %v1290
    %v1292 = vpop.f32.mrb[0].mxu0
    %v1293 = vadd.f32 %v456, %v1292
    %1294 = vdwg.mxu0
    %1295 = vmatprep.subr.bf16.mxu0 %v1003
    %1296 = vmatpush1.bf16.msra.mxu0 %v1002
    %1297 = vmatprep.subr.bf16.mxu0 %v1006
    %1298 = vmatpush1.bf16.msra.mxu0 %v1005
    %1299 = vmatprep.subr.bf16.mxu0 %v1009
    %1300 = vmatpush1.bf16.msra.mxu0 %v1008
    %1301 = vmatprep.subr.bf16.mxu0 %v1012
    %1302 = vmatpush1.bf16.msra.mxu0 %v1011
    %1303 = vmatprep.subr.bf16.mxu0 %v1015
    %1304 = vmatpush1.bf16.msra.mxu0 %v1014
    %1305 = vmatprep.subr.bf16.mxu0 %v1018
    %1306 = vmatpush1.bf16.msra.mxu0 %v1017
    %1307 = vmatprep.subr.bf16.mxu0 %v1021
    %1308 = vmatpush1.bf16.msra.mxu0 %v1020
    %1309 = vmatprep.subr.bf16.mxu0 %v1024
    %1310 = vmatpush1.bf16.msra.mxu0 %v1023
    %1311 = vmatprep.subr.bf16.mxu0 %v1027
    %1312 = vmatpush1.bf16.msra.mxu0 %v1026
    %1313 = vmatprep.subr.bf16.mxu0 %v1030
    %1314 = vmatpush1.bf16.msra.mxu0 %v1029
    %1315 = vmatprep.subr.bf16.mxu0 %v1033
    %1316 = vmatpush1.bf16.msra.mxu0 %v1032
    %1317 = vmatprep.subr.bf16.mxu0 %v1036
    %1318 = vmatpush1.bf16.msra.mxu0 %v1035
    %1319 = vmatprep.subr.bf16.mxu0 %v1039
    %1320 = vmatpush1.bf16.msra.mxu0 %v1038
    %1321 = vmatprep.subr.bf16.mxu0 %v1042
    %1322 = vmatpush1.bf16.msra.mxu0 %v1041
    %1323 = vmatprep.subr.bf16.mxu0 %v1045
    %1324 = vmatpush1.bf16.msra.mxu0 %v1044
    %1325 = vmatprep.subr.bf16.mxu0 %v1048
    %1326 = vmatpush1.bf16.msra.mxu0 %v1047
    %1327 = vmatprep.mubr.bf16.mxu0 %v247
    %1328 = vmatmul.mubr.bf16.gmra.mrb[0].mxu0 %v246
    %v1329 = vpop.f32.mrb[0].mxu0
    %v1330 = vadd.f32 %v1287, %v1329
    %v1331 = vpop.f32.mrb[0].mxu0
    %v1332 = vadd.f32 %v1289, %v1331
    %v1333 = vpop.f32.mrb[0].mxu0
    %v1334 = vadd.f32 %v1291, %v1333
    %v1335 = vpop.f32.mrb[0].mxu0
    %v1336 = vadd.f32 %v1293, %v1335
    %1337 = vdwg.mxu0
    %1338 = vmatprep.subr.bf16.mxu0 %v1051
    %1339 = vmatpush1.bf16.msra.mxu0 %v1050
    %1340 = vmatprep.subr.bf16.mxu0 %v1054
    %1341 = vmatpush1.bf16.msra.mxu0 %v1053
    %1342 = vmatprep.subr.bf16.mxu0 %v1057
    %1343 = vmatpush1.bf16.msra.mxu0 %v1056
    %1344 = vmatprep.subr.bf16.mxu0 %v1060
    %1345 = vmatpush1.bf16.msra.mxu0 %v1059
    %1346 = vmatprep.subr.bf16.mxu0 %v1063
    %1347 = vmatpush1.bf16.msra.mxu0 %v1062
    %1348 = vmatprep.subr.bf16.mxu0 %v1066
    %1349 = vmatpush1.bf16.msra.mxu0 %v1065
    %1350 = vmatprep.subr.bf16.mxu0 %v1069
    %1351 = vmatpush1.bf16.msra.mxu0 %v1068
    %1352 = vmatprep.subr.bf16.mxu0 %v1072
    %1353 = vmatpush1.bf16.msra.mxu0 %v1071
    %1354 = vmatprep.subr.bf16.mxu0 %v1075
    %1355 = vmatpush1.bf16.msra.mxu0 %v1074
    %1356 = vmatprep.subr.bf16.mxu0 %v1078
    %1357 = vmatpush1.bf16.msra.mxu0 %v1077
    %1358 = vmatprep.subr.bf16.mxu0 %v1081
    %1359 = vmatpush1.bf16.msra.mxu0 %v1080
    %1360 = vmatprep.subr.bf16.mxu0 %v1084
    %1361 = vmatpush1.bf16.msra.mxu0 %v1083
    %1362 = vmatprep.subr.bf16.mxu0 %v1087
    %1363 = vmatpush1.bf16.msra.mxu0 %v1086
    %1364 = vmatprep.subr.bf16.mxu0 %v1090
    %1365 = vmatpush1.bf16.msra.mxu0 %v1089
    %1366 = vmatprep.subr.bf16.mxu0 %v1093
    %1367 = vmatpush1.bf16.msra.mxu0 %v1092
    %1368 = vmatprep.subr.bf16.mxu0 %v1096
    %1369 = vmatpush1.bf16.msra.mxu0 %v1095
    %1370 = vmatprep.mubr.bf16.mxu0 %v249
    %1371 = vmatmul.mubr.bf16.gmra.mrb[0].mxu0 %v248
    %v1372 = vpop.f32.mrb[0].mxu0
    %v1373 = vadd.f32 %v1330, %v1372
    %v1374 = vpop.f32.mrb[0].mxu0
    %v1375 = vadd.f32 %v1332, %v1374
    %v1376 = vpop.f32.mrb[0].mxu0
    %v1377 = vadd.f32 %v1334, %v1376
    %v1378 = vpop.f32.mrb[0].mxu0
    %v1379 = vadd.f32 %v1336, %v1378
    %1380 = vdwg.mxu0
    %1381 = vmatprep.subr.bf16.mxu0 %v1099
    %1382 = vmatpush1.bf16.msra.mxu0 %v1098
    %1383 = vmatprep.subr.bf16.mxu0 0
    %1384 = vmatpush1.bf16.msra.mxu0 0
    %1385 = vmatprep.subr.bf16.mxu0 0
    %1386 = vmatpush1.bf16.msra.mxu0 0
    %1387 = vmatprep.subr.bf16.mxu0 0
    %1388 = vmatpush1.bf16.msra.mxu0 0
    %1389 = vmatprep.subr.bf16.mxu0 0
    %1390 = vmatpush1.bf16.msra.mxu0 0
    %1391 = vmatprep.subr.bf16.mxu0 0
    %1392 = vmatpush1.bf16.msra.mxu0 0
    %1393 = vmatprep.subr.bf16.mxu0 0
    %1394 = vmatpush1.bf16.msra.mxu0 0
    %1395 = vmatprep.subr.bf16.mxu0 0
    %1396 = vmatpush1.bf16.msra.mxu0 0
    %1397 = vmatprep.subr.bf16.mxu0 0
    %1398 = vmatpush1.bf16.msra.mxu0 0
    %1399 = vmatprep.subr.bf16.mxu0 0
    %1400 = vmatpush1.bf16.msra.mxu0 0
    %1401 = vmatprep.subr.bf16.mxu0 0
    %1402 = vmatpush1.bf16.msra.mxu0 0
    %1403 = vmatprep.subr.bf16.mxu0 0
    %1404 = vmatpush1.bf16.msra.mxu0 0
    %1405 = vmatprep.subr.bf16.mxu0 0
    %1406 = vmatpush1.bf16.msra.mxu0 0
    %1407 = vmatprep.subr.bf16.mxu0 0
    %1408 = vmatpush1.bf16.msra.mxu0 0
    %1409 = vmatprep.subr.bf16.mxu0 0
    %1410 = vmatpush1.bf16.msra.mxu0 0
    %1411 = vmatprep.subr.bf16.mxu0 0
    %1412 = vmatpush1.bf16.msra.mxu0 0
    %1413 = vmatprep.mubr.bf16.mxu0 0
    %1414 = vmatmul.mubr.bf16.gmra.mrb[0].mxu0 %v1250
    %v1415 = vpop.f32.mrb[0].mxu0
    %v1416 = vadd.f32 %v1373, %v1415
    %v1417 = vpop.f32.mrb[0].mxu0
    %v1418 = vadd.f32 %v1375, %v1417
    %v1419 = vpop.f32.mrb[0].mxu0
    %v1420 = vadd.f32 %v1377, %v1419
    %v1421 = vpop.f32.mrb[0].mxu0
    %v1422 = vadd.f32 %v1379, %v1421
    %1423 = vdwg.mxu0
    %1424 = vmatprep.subr.bf16.mxu0 0
    %1425 = vmatpush1.bf16.msra.mxu0 %v956
    %1426 = vmatprep.subr.bf16.mxu0 0
    %1427 = vmatpush1.bf16.msra.mxu0 %v959
    %1428 = vmatprep.subr.bf16.mxu0 0
    %1429 = vmatpush1.bf16.msra.mxu0 %v962
    %1430 = vmatprep.subr.bf16.mxu0 0
    %1431 = vmatpush1.bf16.msra.mxu0 %v965
    %1432 = vmatprep.subr.bf16.mxu0 0
    %1433 = vmatpush1.bf16.msra.mxu0 %v968
    %1434 = vmatprep.subr.bf16.mxu0 0
    %1435 = vmatpush1.bf16.msra.mxu0 %v971
    %1436 = vmatprep.subr.bf16.mxu0 0
    %1437 = vmatpush1.bf16.msra.mxu0 %v974
    %1438 = vmatprep.subr.bf16.mxu0 0
    %1439 = vmatpush1.bf16.msra.mxu0 %v977
    %1440 = vmatprep.subr.bf16.mxu0 0
    %1441 = vmatpush1.bf16.msra.mxu0 %v980
    %1442 = vmatprep.subr.bf16.mxu0 0
    %1443 = vmatpush1.bf16.msra.mxu0 %v983
    %1444 = vmatprep.subr.bf16.mxu0 0
    %1445 = vmatpush1.bf16.msra.mxu0 %v986
    %1446 = vmatprep.subr.bf16.mxu0 0
    %1447 = vmatpush1.bf16.msra.mxu0 %v989
    %1448 = vmatprep.subr.bf16.mxu0 0
    %1449 = vmatpush1.bf16.msra.mxu0 %v992
    %1450 = vmatprep.subr.bf16.mxu0 0
    %1451 = vmatpush1.bf16.msra.mxu0 %v995
    %1452 = vmatprep.subr.bf16.mxu0 0
    %1453 = vmatpush1.bf16.msra.mxu0 %v998
    %1454 = vmatprep.subr.bf16.mxu0 0
    %1455 = vmatpush1.bf16.msra.mxu0 %v1001
    %1456 = vmatprep.mubr.bf16.mxu0 %v245
    %1457 = vmatmul.mubr.bf16.gmra.mrb[0].mxu0 %v244
    %v1458 = vpop.f32.mrb[0].mxu0
    %v1459 = vadd.f32 %v460, %v1458
    %v1460 = vpop.f32.mrb[0].mxu0
    %v1461 = vpop.f32.mrb[0].mxu0
    %v1462 = vadd.f32 %v460, %v1461
    %v1463 = vpop.f32.mrb[0].mxu0
    %1464 = vdwg.mxu0
    %1465 = vmatprep.subr.bf16.mxu0 0
    %1466 = vmatpush1.bf16.msra.mxu0 %v1004
    %1467 = vmatprep.subr.bf16.mxu0 0
    %1468 = vmatpush1.bf16.msra.mxu0 %v1007
    %1469 = vmatprep.subr.bf16.mxu0 0
    %1470 = vmatpush1.bf16.msra.mxu0 %v1010
    %1471 = vmatprep.subr.bf16.mxu0 0
    %1472 = vmatpush1.bf16.msra.mxu0 %v1013
    %1473 = vmatprep.subr.bf16.mxu0 0
    %1474 = vmatpush1.bf16.msra.mxu0 %v1016
    %1475 = vmatprep.subr.bf16.mxu0 0
    %1476 = vmatpush1.bf16.msra.mxu0 %v1019
    %1477 = vmatprep.subr.bf16.mxu0 0
    %1478 = vmatpush1.bf16.msra.mxu0 %v1022
    %1479 = vmatprep.subr.bf16.mxu0 0
    %1480 = vmatpush1.bf16.msra.mxu0 %v1025
    %1481 = vmatprep.subr.bf16.mxu0 0
    %1482 = vmatpush1.bf16.msra.mxu0 %v1028
    %1483 = vmatprep.subr.bf16.mxu0 0
    %1484 = vmatpush1.bf16.msra.mxu0 %v1031
    %1485 = vmatprep.subr.bf16.mxu0 0
    %1486 = vmatpush1.bf16.msra.mxu0 %v1034
    %1487 = vmatprep.subr.bf16.mxu0 0
    %1488 = vmatpush1.bf16.msra.mxu0 %v1037
    %1489 = vmatprep.subr.bf16.mxu0 0
    %1490 = vmatpush1.bf16.msra.mxu0 %v1040
    %1491 = vmatprep.subr.bf16.mxu0 0
    %1492 = vmatpush1.bf16.msra.mxu0 %v1043
    %1493 = vmatprep.subr.bf16.mxu0 0
    %1494 = vmatpush1.bf16.msra.mxu0 %v1046
    %1495 = vmatprep.subr.bf16.mxu0 0
    %1496 = vmatpush1.bf16.msra.mxu0 %v1049
    %1497 = vmatprep.mubr.bf16.mxu0 %v247
    %1498 = vmatmul.mubr.bf16.gmra.mrb[0].mxu0 %v246
    %v1499 = vpop.f32.mrb[0].mxu0
    %v1500 = vadd.f32 %v1459, %v1499
    %v1501 = vpop.f32.mrb[0].mxu0
    %v1502 = vpop.f32.mrb[0].mxu0
    %v1503 = vadd.f32 %v1462, %v1502
    %v1504 = vpop.f32.mrb[0].mxu0
    %1505 = vdwg.mxu0
    %1506 = vmatprep.subr.bf16.mxu0 0
    %1507 = vmatpush1.bf16.msra.mxu0 %v1052
    %1508 = vmatprep.subr.bf16.mxu0 0
    %1509 = vmatpush1.bf16.msra.mxu0 %v1055
    %1510 = vmatprep.subr.bf16.mxu0 0
    %1511 = vmatpush1.bf16.msra.mxu0 %v1058
    %1512 = vmatprep.subr.bf16.mxu0 0
    %1513 = vmatpush1.bf16.msra.mxu0 %v1061
    %1514 = vmatprep.subr.bf16.mxu0 0
    %1515 = vmatpush1.bf16.msra.mxu0 %v1064
    %1516 = vmatprep.subr.bf16.mxu0 0
    %1517 = vmatpush1.bf16.msra.mxu0 %v1067
    %1518 = vmatprep.subr.bf16.mxu0 0
    %1519 = vmatpush1.bf16.msra.mxu0 %v1070
    %1520 = vmatprep.subr.bf16.mxu0 0
    %1521 = vmatpush1.bf16.msra.mxu0 %v1073
    %1522 = vmatprep.subr.bf16.mxu0 0
    %1523 = vmatpush1.bf16.msra.mxu0 %v1076
    %1524 = vmatprep.subr.bf16.mxu0 0
    %1525 = vmatpush1.bf16.msra.mxu0 %v1079
    %1526 = vmatprep.subr.bf16.mxu0 0
    %1527 = vmatpush1.bf16.msra.mxu0 %v1082
    %1528 = vmatprep.subr.bf16.mxu0 0
    %1529 = vmatpush1.bf16.msra.mxu0 %v1085
    %1530 = vmatprep.subr.bf16.mxu0 0
    %1531 = vmatpush1.bf16.msra.mxu0 %v1088
    %1532 = vmatprep.subr.bf16.mxu0 0
    %1533 = vmatpush1.bf16.msra.mxu0 %v1091
    %1534 = vmatprep.subr.bf16.mxu0 0
    %1535 = vmatpush1.bf16.msra.mxu0 %v1094
    %1536 = vmatprep.subr.bf16.mxu0 0
    %1537 = vmatpush1.bf16.msra.mxu0 %v1097
    %1538 = vmatprep.mubr.bf16.mxu0 %v249
    %1539 = vmatmul.mubr.bf16.gmra.mrb[0].mxu0 %v248
    %v1540 = vpop.f32.mrb[0].mxu0
    %v1541 = vadd.f32 %v1500, %v1540
    %v1542 = vpop.f32.mrb[0].mxu0
    %v1543 = vpop.f32.mrb[0].mxu0
    %v1544 = vadd.f32 %v1503, %v1543
    %v1545 = vpop.f32.mrb[0].mxu0
    %1546 = vdwg.mxu0
    %1547 = vmatprep.subr.bf16.mxu0 0
    %1548 = vmatpush1.bf16.msra.mxu0 %v1100
    %1549 = vmatprep.subr.bf16.mxu0 0
    %1550 = vmatpush1.bf16.msra.mxu0 0
    %1551 = vmatprep.subr.bf16.mxu0 0
    %1552 = vmatpush1.bf16.msra.mxu0 0
    %1553 = vmatprep.subr.bf16.mxu0 0
    %1554 = vmatpush1.bf16.msra.mxu0 0
    %1555 = vmatprep.subr.bf16.mxu0 0
    %1556 = vmatpush1.bf16.msra.mxu0 0
    %1557 = vmatprep.subr.bf16.mxu0 0
    %1558 = vmatpush1.bf16.msra.mxu0 0
    %1559 = vmatprep.subr.bf16.mxu0 0
    %1560 = vmatpush1.bf16.msra.mxu0 0
    %1561 = vmatprep.subr.bf16.mxu0 0
    %1562 = vmatpush1.bf16.msra.mxu0 0
    %1563 = vmatprep.subr.bf16.mxu0 0
    %1564 = vmatpush1.bf16.msra.mxu0 0
    %1565 = vmatprep.subr.bf16.mxu0 0
    %1566 = vmatpush1.bf16.msra.mxu0 0
    %1567 = vmatprep.subr.bf16.mxu0 0
    %1568 = vmatpush1.bf16.msra.mxu0 0
    %1569 = vmatprep.subr.bf16.mxu0 0
    %1570 = vmatpush1.bf16.msra.mxu0 0
    %1571 = vmatprep.subr.bf16.mxu0 0
    %1572 = vmatpush1.bf16.msra.mxu0 0
    %1573 = vmatprep.subr.bf16.mxu0 0
    %1574 = vmatpush1.bf16.msra.mxu0 0
    %1575 = vmatprep.subr.bf16.mxu0 0
    %1576 = vmatpush1.bf16.msra.mxu0 0
    %1577 = vmatprep.subr.bf16.mxu0 0
    %1578 = vmatpush1.bf16.msra.mxu0 0
    %1579 = vmatprep.mubr.bf16.mxu0 0
    %1580 = vmatmul.mubr.bf16.gmra.mrb[0].mxu0 %v1250
    %v1581 = vpop.f32.mrb[0].mxu0
    %v1582 = vadd.f32 %v1541, %v1581
    %v1583 = vpop.f32.mrb[0].mxu0
    %v1584 = vpop.f32.mrb[0].mxu0
    %v1585 = vadd.f32 %v1544, %v1584
    %v1586 = vpop.f32.mrb[0].mxu0
    %1587 = vdwg.mxu0
    %v1588 = vmax.f32 %v1416, 0.0
    %v1589 = vmax.f32 %v1418, 0.0
    %v1590 = vmax.f32 %v1582, 0.0
    %v1591 = vmax.f32 %v1420, 0.0
    %v1592 = vmax.f32 %v1422, 0.0
    %v1593 = vmax.f32 %v1585, 0.0
    %v1594 = vpack.c.bf16 %v1591, %v1588
    %v1595 = vpack.c.bf16 %v1592, %v1589
    %v1596 = vpack.c.bf16 %v1593, %v1590
    %v1597 = vld [vmem:[%s3] sm:$0xf]
    %v1598 = vld [vmem:[%s3 + $0x4] sm:$0xf]
    %v1599 = vld [vmem:[%s3 + $0x8] sm:$0xf]
    %v1600 = vld [vmem:[%s3 + $0xc] sm:$0xf]
    %v1601 = vld [vmem:[%s3 + $0x10] sm:$0xf]
    %v1602 = vld [vmem:[%s3 + $0x14] sm:$0xf]
    %v1603 = vld [vmem:[%s3 + $0x18] sm:$0xf]
    %v1604 = vld [vmem:[%s3 + $0x1c] sm:$0xf]
    %v1605 = vld [vmem:[%s3 + $0x20] sm:$0xf]
    %v1606 = vld [vmem:[%s3 + $0x24] sm:$0xf]
    %v1607 = vld [vmem:[%s3 + $0x28] sm:$0xf]
    %v1608 = vld [vmem:[%s3 + $0x2c] sm:$0xf]
    %v1609 = vld [vmem:[%s3 + $0x30] sm:$0xf]
    %v1610 = vld [vmem:[%s3 + $0x34] sm:$0xf]
    %v1611 = vld [vmem:[%s3 + $0x38] sm:$0xf]
    %v1612 = vld [vmem:[%s3 + $0x3c] sm:$0xf]
    %v1613 = vld [vmem:[%s3 + $0x40] sm:$0xf]
    %v1614 = vld [vmem:[%s3 + $0x44] sm:$0xf]
    %v1615 = vld [vmem:[%s3 + $0x48] sm:$0xf]
    %v1616 = vld [vmem:[%s3 + $0x4c] sm:$0xf]
    %v1617 = vld [vmem:[%s3 + $0x50] sm:$0xf]
    %v1618 = vld [vmem:[%s3 + $0x54] sm:$0xf]
    %v1619 = vld [vmem:[%s3 + $0x58] sm:$0xf]
    %v1620 = vld [vmem:[%s3 + $0x5c] sm:$0xf]
    %v1621 = vld [vmem:[%s3 + $0x60] sm:$0xf]
    %v1622 = vld [vmem:[%s3 + $0x64] sm:$0xf]
    %v1623 = vld [vmem:[%s3 + $0x68] sm:$0xf]
    %v1624 = vld [vmem:[%s3 + $0x6c] sm:$0xf]
    %v1625 = vld [vmem:[%s3 + $0x70] sm:$0xf]
    %v1626 = vld [vmem:[%s3 + $0x74] sm:$0xf]
    %v1627 = vld [vmem:[%s3 + $0x78] sm:$0xf]
    %v1628 = vld [vmem:[%s3 + $0x7c] sm:$0xf]
    %v1629 = vld [vmem:[%s3 + $0x80] sm:$0xf]
    %v1630 = vld [vmem:[%s3 + $0x84] sm:$0xf]
    %v1631 = vld [vmem:[%s3 + $0x88] sm:$0xf]
    %v1632 = vld [vmem:[%s3 + $0x8c] sm:$0xf]
    %v1633 = vld [vmem:[%s3 + $0x90] sm:$0xf]
    %v1634 = vld [vmem:[%s3 + $0x94] sm:$0xf]
    %v1635 = vld [vmem:[%s3 + $0x98] sm:$0xf]
    %v1636 = vld [vmem:[%s3 + $0x9c] sm:$0xf]
    %v1637 = vld [vmem:[%s3 + $0xa0] sm:$0xf]
    %v1638 = vld [vmem:[%s3 + $0xa4] sm:$0xf]
    %v1639 = vld [vmem:[%s3 + $0xa8] sm:$0xf]
    %v1640 = vld [vmem:[%s3 + $0xac] sm:$0xf]
    %v1641 = vld [vmem:[%s3 + $0xb0] sm:$0xf]
    %v1642 = vld [vmem:[%s3 + $0xb4] sm:$0xf]
    %v1643 = vld [vmem:[%s3 + $0xb8] sm:$0xf]
    %v1644 = vld [vmem:[%s3 + $0xbc] sm:$0xf]
    %v1645 = vld [vmem:[%s4] sm:$0x1]
    %v1647 = vlaneseq
    %v1648 = vshrl.u32 %v1647, 7
    %v1649 = vsub.s32 0, %v1648
    %v1650 = vrot.slane %v1645, %v1649
    %v1700 = vunpack.c.l.b16 %v1597
    %v1701 = vunpack.c.l.b16 %v1598
    %v1702 = vunpack.c.l.b16 %v1599
    %v1703 = vunpack.c.l.b16 %v1600
    %v1704 = vunpack.c.l.b16 %v1601
    %v1705 = vunpack.c.l.b16 %v1602
    %v1706 = vunpack.c.l.b16 %v1603
    %v1707 = vunpack.c.l.b16 %v1604
    %v1708 = vunpack.c.l.b16 %v1605
    %v1709 = vunpack.c.l.b16 %v1606
    %v1710 = vunpack.c.l.b16 %v1607
    %v1711 = vunpack.c.l.b16 %v1608
    %v1712 = vunpack.c.l.b16 %v1609
    %v1713 = vunpack.c.l.b16 %v1610
    %v1714 = vunpack.c.l.b16 %v1611
    %v1715 = vunpack.c.l.b16 %v1612
    %v1716 = vunpack.c.l.b16 %v1613
    %v1717 = vunpack.c.l.b16 %v1614
    %v1718 = vunpack.c.l.b16 %v1615
    %v1719 = vunpack.c.l.b16 %v1616
    %v1720 = vunpack.c.l.b16 %v1617
    %v1721 = vunpack.c.l.b16 %v1618
    %v1722 = vunpack.c.l.b16 %v1619
    %v1723 = vunpack.c.l.b16 %v1620
    %v1724 = vunpack.c.l.b16 %v1621
    %v1725 = vunpack.c.l.b16 %v1622
    %v1726 = vunpack.c.l.b16 %v1623
    %v1727 = vunpack.c.l.b16 %v1624
    %v1728 = vunpack.c.l.b16 %v1625
    %v1729 = vunpack.c.l.b16 %v1626
    %v1730 = vunpack.c.l.b16 %v1627
    %v1731 = vunpack.c.l.b16 %v1628
    %v1732 = vunpack.c.l.b16 %v1629
    %v1733 = vunpack.c.l.b16 %v1630
    %v1734 = vunpack.c.l.b16 %v1631
    %v1735 = vunpack.c.l.b16 %v1632
    %v1736 = vunpack.c.l.b16 %v1633
    %v1737 = vunpack.c.l.b16 %v1634
    %v1738 = vunpack.c.l.b16 %v1635
    %v1739 = vunpack.c.l.b16 %v1636
    %v1740 = vunpack.c.l.b16 %v1637
    %v1741 = vunpack.c.l.b16 %v1638
    %v1742 = vunpack.c.l.b16 %v1639
    %v1743 = vunpack.c.l.b16 %v1640
    %v1744 = vunpack.c.l.b16 %v1641
    %v1745 = vunpack.c.l.b16 %v1642
    %v1746 = vunpack.c.l.b16 %v1643
    %v1747 = vunpack.c.l.b16 %v1644
    %v1748 = vpack.c.b16 %v1701, %v1700
    %v1749 = vpack.c.b16 %v1703, %v1702
    %v1750 = vpack.c.b16 %v1705, %v1704
    %v1751 = vpack.c.b16 %v1707, %v1706
    %v1752 = vpack.c.b16 %v1709, %v1708
    %v1753 = vpack.c.b16 %v1711, %v1710
    %v1754 = vpack.c.b16 %v1713, %v1712
    %v1755 = vpack.c.b16 %v1715, %v1714
    %v1756 = vpack.c.b16 %v1717, %v1716
    %v1757 = vpack.c.b16 %v1719, %v1718
    %v1758 = vpack.c.b16 %v1721, %v1720
    %v1759 = vpack.c.b16 %v1723, %v1722
    %v1760 = vpack.c.b16 %v1725, %v1724
    %v1761 = vpack.c.b16 %v1727, %v1726
    %v1762 = vpack.c.b16 %v1729, %v1728
    %v1763 = vpack.c.b16 %v1731, %v1730
    %v1764 = vpack.c.b16 %v1733, %v1732
    %v1765 = vpack.c.b16 %v1735, %v1734
    %v1766 = vpack.c.b16 %v1737, %v1736
    %v1767 = vpack.c.b16 %v1739, %v1738
    %v1768 = vpack.c.b16 %v1741, %v1740
    %v1769 = vpack.c.b16 %v1743, %v1742
    %v1770 = vpack.c.b16 %v1745, %v1744
    %v1771 = vpack.c.b16 %v1747, %v1746
    %1796 = vmatprep.subr.bf16.mxu0 0
    %1797 = vmatpush1.bf16.msra.mxu0 %v1748
    %1798 = vmatprep.subr.bf16.mxu0 0
    %1799 = vmatpush1.bf16.msra.mxu0 %v1749
    %1800 = vmatprep.subr.bf16.mxu0 0
    %1801 = vmatpush1.bf16.msra.mxu0 %v1750
    %1802 = vmatprep.subr.bf16.mxu0 0
    %1803 = vmatpush1.bf16.msra.mxu0 %v1751
    %1804 = vmatprep.subr.bf16.mxu0 0
    %1805 = vmatpush1.bf16.msra.mxu0 %v1752
    %1806 = vmatprep.subr.bf16.mxu0 0
    %1807 = vmatpush1.bf16.msra.mxu0 %v1753
    %1808 = vmatprep.subr.bf16.mxu0 0
    %1809 = vmatpush1.bf16.msra.mxu0 %v1754
    %1810 = vmatprep.subr.bf16.mxu0 0
    %1811 = vmatpush1.bf16.msra.mxu0 %v1755
    %1812 = vmatprep.subr.bf16.mxu0 0
    %1813 = vmatpush1.bf16.msra.mxu0 %v1756
    %1814 = vmatprep.subr.bf16.mxu0 0
    %1815 = vmatpush1.bf16.msra.mxu0 %v1757
    %1816 = vmatprep.subr.bf16.mxu0 0
    %1817 = vmatpush1.bf16.msra.mxu0 %v1758
    %1818 = vmatprep.subr.bf16.mxu0 0
    %1819 = vmatpush1.bf16.msra.mxu0 %v1759
    %1820 = vmatprep.subr.bf16.mxu0 0
    %1821 = vmatpush1.bf16.msra.mxu0 %v1760
    %1822 = vmatprep.subr.bf16.mxu0 0
    %1823 = vmatpush1.bf16.msra.mxu0 %v1761
    %1824 = vmatprep.subr.bf16.mxu0 0
    %1825 = vmatpush1.bf16.msra.mxu0 %v1762
    %1826 = vmatprep.subr.bf16.mxu0 0
    %1827 = vmatpush1.bf16.msra.mxu0 %v1763
    %1828 = vmatprep.mubr.bf16.mxu0 %v1595
    %1829 = vmatmul.mubr.bf16.gmra.mrb[0].mxu0 %v1594
    %v1830 = vpop.f32.mrb[0].mxu0
    %v1831 = vadd.f32 %v1650, %v1830
    %v1832 = vpop.f32.mrb[0].mxu0
    %v1833 = vpop.f32.mrb[0].mxu0
    %v1834 = vadd.f32 %v1650, %v1833
    %v1835 = vpop.f32.mrb[0].mxu0
    %1836 = vdwg.mxu0
    %1837 = vmatprep.subr.bf16.mxu0 0
    %1838 = vmatpush1.bf16.msra.mxu0 %v1764
    %1839 = vmatprep.subr.bf16.mxu0 0
    %1840 = vmatpush1.bf16.msra.mxu0 %v1765
    %1841 = vmatprep.subr.bf16.mxu0 0
    %1842 = vmatpush1.bf16.msra.mxu0 %v1766
    %1843 = vmatprep.subr.bf16.mxu0 0
    %1844 = vmatpush1.bf16.msra.mxu0 %v1767
    %1845 = vmatprep.subr.bf16.mxu0 0
    %1846 = vmatpush1.bf16.msra.mxu0 %v1768
    %1847 = vmatprep.subr.bf16.mxu0 0
    %1848 = vmatpush1.bf16.msra.mxu0 %v1769
    %1849 = vmatprep.subr.bf16.mxu0 0
    %1850 = vmatpush1.bf16.msra.mxu0 %v1770
    %1851 = vmatprep.subr.bf16.mxu0 0
    %1852 = vmatpush1.bf16.msra.mxu0 %v1771
    %1853 = vmatprep.subr.bf16.mxu0 0
    %1854 = vmatpush1.bf16.msra.mxu0 0
    %1855 = vmatprep.subr.bf16.mxu0 0
    %1856 = vmatpush1.bf16.msra.mxu0 0
    %1857 = vmatprep.subr.bf16.mxu0 0
    %1858 = vmatpush1.bf16.msra.mxu0 0
    %1859 = vmatprep.subr.bf16.mxu0 0
    %1860 = vmatpush1.bf16.msra.mxu0 0
    %1861 = vmatprep.subr.bf16.mxu0 0
    %1862 = vmatpush1.bf16.msra.mxu0 0
    %1863 = vmatprep.subr.bf16.mxu0 0
    %1864 = vmatpush1.bf16.msra.mxu0 0
    %1865 = vmatprep.subr.bf16.mxu0 0
    %1866 = vmatpush1.bf16.msra.mxu0 0
    %1867 = vmatprep.subr.bf16.mxu0 0
    %1868 = vmatpush1.bf16.msra.mxu0 0
    %1869 = vmatprep.mubr.bf16.mxu0 0
    %1870 = vmatmul.mubr.bf16.gmra.mrb[0].mxu0 %v1596
    %v1871 = vpop.f32.mrb[0].mxu0
    %v1872 = vadd.f32 %v1831, %v1871
    %v1873 = vpop.f32.mrb[0].mxu0
    %v1874 = vpop.f32.mrb[0].mxu0
    %v1875 = vadd.f32 %v1834, %v1874
    %v1876 = vpop.f32.mrb[0].mxu0
    %1877 = vdwg.mxu0
    %v1878 = vmax.f32 %v1872, 0.0
    %v1879 = vmax.f32 %v1875, 0.0
    %v1880 = vpack.c.bf16 %v1879, %v1878
    %v1881 = vld [vmem:[#allocation5] sm:$0xf]
    %v1882 = vld [vmem:[#allocation5 + $0x4] sm:$0xf]
    %v1883 = vld [vmem:[#allocation5 + $0x8] sm:$0xf]
    %v1884 = vld [vmem:[#allocation5 + $0xc] sm:$0xf]
    %v1885 = vld [vmem:[#allocation5 + $0x10] sm:$0xf]
    %v1886 = vld [vmem:[#allocation5 + $0x14] sm:$0xf]
    %v1887 = vld [vmem:[#allocation5 + $0x18] sm:$0xf]
    %v1888 = vld [vmem:[#allocation5 + $0x1c] sm:$0xf]
    %v1889 = vld [vmem:[#allocation5 + $0x20] sm:$0xf]
    %v1890 = vld [vmem:[#allocation5 + $0x24] sm:$0xf]
    %v1891 = vld [vmem:[#allocation5 + $0x28] sm:$0xf]
    %v1892 = vld [vmem:[#allocation5 + $0x2c] sm:$0xf]
    %v1893 = vld [vmem:[#allocation5 + $0x30] sm:$0xf]
    %v1894 = vld [vmem:[#allocation5 + $0x34] sm:$0xf]
    %v1895 = vld [vmem:[#allocation5 + $0x38] sm:$0xf]
    %v1896 = vld [vmem:[#allocation5 + $0x3c] sm:$0xf]
    %v1897 = vld [vmem:[%s6] sm:$0x1]
    %v1899 = vlaneseq
    %v1900 = vshrl.u32 %v1899, 7
    %v1901 = vsub.s32 0, %v1900
    %v1902 = vrot.slane %v1897, %v1901
    %v1920 = vunpack.c.l.b16 %v1881
    %v1921 = vunpack.c.l.b16 %v1882
    %v1922 = vunpack.c.l.b16 %v1883
    %v1923 = vunpack.c.l.b16 %v1884
    %v1924 = vunpack.c.l.b16 %v1885
    %v1925 = vunpack.c.l.b16 %v1886
    %v1926 = vunpack.c.l.b16 %v1887
    %v1927 = vunpack.c.l.b16 %v1888
    %v1928 = vunpack.c.l.b16 %v1889
    %v1929 = vunpack.c.l.b16 %v1890
    %v1930 = vunpack.c.l.b16 %v1891
    %v1931 = vunpack.c.l.b16 %v1892
    %v1932 = vunpack.c.l.b16 %v1893
    %v1933 = vunpack.c.l.b16 %v1894
    %v1934 = vunpack.c.l.b16 %v1895
    %v1935 = vunpack.c.l.b16 %v1896
    %v1936 = vpack.c.b16 %v1921, %v1920
    %v1937 = vpack.c.b16 %v1923, %v1922
    %v1938 = vpack.c.b16 %v1925, %v1924
    %v1939 = vpack.c.b16 %v1927, %v1926
    %v1940 = vpack.c.b16 %v1929, %v1928
    %v1941 = vpack.c.b16 %v1931, %v1930
    %v1942 = vpack.c.b16 %v1933, %v1932
    %v1943 = vpack.c.b16 %v1935, %v1934
    %1952 = vmatprep.subr.bf16.mxu0 0
    %1953 = vmatpush1.bf16.msra.mxu0 %v1936
    %1954 = vmatprep.subr.bf16.mxu0 0
    %1955 = vmatpush1.bf16.msra.mxu0 %v1937
    %1956 = vmatprep.subr.bf16.mxu0 0
    %1957 = vmatpush1.bf16.msra.mxu0 %v1938
    %1958 = vmatprep.subr.bf16.mxu0 0
    %1959 = vmatpush1.bf16.msra.mxu0 %v1939
    %1960 = vmatprep.subr.bf16.mxu0 0
    %1961 = vmatpush1.bf16.msra.mxu0 %v1940
    %1962 = vmatprep.subr.bf16.mxu0 0
    %1963 = vmatpush1.bf16.msra.mxu0 %v1941
    %1964 = vmatprep.subr.bf16.mxu0 0
    %1965 = vmatpush1.bf16.msra.mxu0 %v1942
    %1966 = vmatprep.subr.bf16.mxu0 0
    %1967 = vmatpush1.bf16.msra.mxu0 %v1943
    %1968 = vmatprep.subr.bf16.mxu0 0
    %1969 = vmatpush1.bf16.msra.mxu0 0
    %1970 = vmatprep.subr.bf16.mxu0 0
    %1971 = vmatpush1.bf16.msra.mxu0 0
    %1972 = vmatprep.subr.bf16.mxu0 0
    %1973 = vmatpush1.bf16.msra.mxu0 0
    %1974 = vmatprep.subr.bf16.mxu0 0
    %1975 = vmatpush1.bf16.msra.mxu0 0
    %1976 = vmatprep.subr.bf16.mxu0 0
    %1977 = vmatpush1.bf16.msra.mxu0 0
    %1978 = vmatprep.subr.bf16.mxu0 0
    %1979 = vmatpush1.bf16.msra.mxu0 0
    %1980 = vmatprep.subr.bf16.mxu0 0
    %1981 = vmatpush1.bf16.msra.mxu0 0
    %1982 = vmatprep.subr.bf16.mxu0 0
    %1983 = vmatpush1.bf16.msra.mxu0 0
    %1984 = vmatprep.mubr.bf16.mxu0 0
    %1985 = vmatmul.mubr.bf16.gmra.mrb[0].mxu0 %v1880
    %v1986 = vpop.f32.mrb[0].mxu0
    %v1987 = vadd.f32 %v1902, %v1986
    %v1988 = vpop.f32.mrb[0].mxu0
    %v1989 = vpop.f32.mrb[0].mxu0
    %v1990 = vadd.f32 %v1902, %v1989
    %v1991 = vpop.f32.mrb[0].mxu0
    %1992 = vdwg.mxu0
    %1993 = vst [vmem:[#allocation7] sm:$0xff] %v1987
    %1994 = vst [vmem:[#allocation7 + $0x8] sm:$0xff] %v1990
    // Predicated region
    $region38: #{fc_forward.1} parent=1 // pred_check
      _
    $region39: #{fc_forward.1} parent=1 // pred_check_branch
      %1996 = sbr.rel (0) target = $region41
    $region40: #{fc_forward.1} parent=1 // pred_region
      %s1998 = ssub.s32 256, 32
      %1999 = vsyncadd [#allocation4], %s1998
      %s2000 = sshll.u32 [#allocation7], 4
      %s2001 = int_to_ptr.vmem [resolvable:$true] %s2000
      %2006 = dma.vmem_to_hbm [thread:$0]  %s2001, 32, %s7, [#allocation4], 32, 32, 2
    $region41: #{fc_forward.1} parent=1 // pred_fallthru
      _
    // Predicated region
    $region42: #{fc_forward.1} parent=1 // pred_check
      _
    $region43: #{fc_forward.1} parent=1 // pred_check_branch
      %2008 = sbr.rel (0) target = $region45
    $region44: #{fc_forward.1} parent=1 // pred_region
      %2009 = dma.done [#allocation4], 256
    $region45: #{fc_forward.1} parent=1 // pred_fallthru
      _
    %2010 = vsyncpa [#allocation3], 1
    %2011 = vsyncpa [#allocation6], 1
    %2012 = vsyncpa [#allocation4], 1

</llo_original>
